<compile_context>
chip_gen: v5e
topology: v5e:2x2
jax: 0.10.0
libtpu: 0.0.40
codegen_flags: <defaults>
</compile_context>

<pallas_src>
import functools

import jax
import jax.numpy as jnp
from jax.experimental import pallas as pl
from jax.experimental.pallas import tpu as pltpu

BN_EPS = 1e-5


# ----------------------------------------------------------------------------
# Fused inverted-residual block kernel.
# One grid step = (batch element n, row stripe r) of the block output.
# ----------------------------------------------------------------------------
def _block_kernel(x_ref, w_exp_ref, s_exp_ref, b_exp_ref,
                  w_dw_ref, s_dw_ref, b_dw_ref,
                  w_pw_ref, s_pw_ref, b_pw_ref,
                  o_ref, hid_ref, *, th, w_out, is_res):
    r = pl.program_id(1)
    n_stripes = pl.num_programs(1)
    hidden = hid_ref.shape[-1]
    cin = x_ref.shape[-1]
    cout = o_ref.shape[-1]

    # Zero the hidden scratch: left/right border columns (and, conditionally,
    # the top/bottom halo rows) provide the depthwise "same" zero padding.
    hid_ref[...] = jnp.zeros_like(hid_ref)

    # ---- expand: 1x1 conv + BN + ReLU6 over th+2 rows (1-row halo each side).
    # x_ref holds the whole (row-padded) subsampled image for batch element n.
    row0 = pl.multiple_of(r * th, th)
    xb = x_ref[:, pl.ds(row0, th + 2), :, :]               # (1, th+2, W, Cin) bf16
    xm = xb.reshape((th + 2) * w_out, cin)
    h = jnp.dot(xm, w_exp_ref[...], preferred_element_type=jnp.float32)
    h = h * s_exp_ref[...] + b_exp_ref[...]
    h = jnp.clip(h, 0.0, 6.0)                               # ReLU6 in f32
    hid_ref[:, pl.ds(1, w_out), :] = h.reshape(th + 2, w_out, hidden)

    # Hidden rows outside the image must be zero for the depthwise padding
    # (expand of a zero-padded input row would leak ReLU6(bn_bias) instead).
    @pl.when(r == 0)
    def _():
        hid_ref[pl.ds(0, 1), :, :] = jnp.zeros((1, w_out + 2, hidden),
                                               jnp.float32)

    @pl.when(r == n_stripes - 1)
    def _():
        hid_ref[pl.ds(th + 1, 1), :, :] = jnp.zeros((1, w_out + 2, hidden),
                                                    jnp.float32)

    # ---- depthwise 3x3 (stride 1, pad 1) + BN + ReLU6, f32 on the VPU ----
    acc = jnp.zeros((th, w_out, hidden), jnp.float32)
    for dy in range(3):
        for dx in range(3):
            tap = hid_ref[pl.ds(dy, th), pl.ds(dx, w_out), :]
            acc = acc + tap * w_dw_ref[dy, dx, :].astype(jnp.float32)
    acc = acc * s_dw_ref[...] + b_dw_ref[...]
    acc = jnp.clip(acc, 0.0, 6.0)

    # ---- project: 1x1 conv + BN (+ fused residual add) ----
    pm = acc.reshape(th * w_out, hidden).astype(jnp.bfloat16)
    out = jnp.dot(pm, w_pw_ref[...], preferred_element_type=jnp.float32)
    out = out * s_pw_ref[...] + b_pw_ref[...]
    if is_res:
        res = x_ref[:, pl.ds(row0 + 1, th), :, :].astype(jnp.float32)
        out = out + res.reshape(th * w_out, cout)
    o_ref[...] = out.reshape(1, th, w_out, cout).astype(o_ref.dtype)


def _stripe_height(h_out):
    # 8-row stripes (sublane friendly) when they tile H exactly, else full H.
    return 8 if (h_out % 8 == 0) else h_out


def inverted_residual_block(x, p, *, stride, is_res):
    """x: (N, H, W, Cin) bf16 NHWC -> (N, H', W', Cout) bf16."""
    if stride > 1:
        # This module's 1x1 expand conv carries the stride (pad 0), which is
        # exactly spatial subsampling before the per-pixel matmul.
        x = x[:, ::stride, ::stride, :]
    N, Ho, Wo, Cin = x.shape
    hidden = p["w_exp"].shape[1]
    Cout = p["w_pw"].shape[1]
    th = _stripe_height(Ho)
    n_stripes = Ho // th

    # 1-row halo on the *small* Cin input tensor only; the hidden activation is
    # never padded / written to HBM.
    x_pad = jnp.pad(x, ((0, 0), (1, 1), (0, 0), (0, 0)))

    kernel = functools.partial(_block_kernel, th=th, w_out=Wo, is_res=is_res)

    def wspec(shape):  # weights / BN params: constant index_map -> VMEM resident
        return pl.BlockSpec(shape, lambda n, r, _d=len(shape): (0,) * _d)

    out = pl.pallas_call(
        kernel,
        out_shape=jax.ShapeDtypeStruct((N, Ho, Wo, Cout), jnp.bfloat16),
        grid=(N, n_stripes),
        in_specs=[
            pl.BlockSpec((1, Ho + 2, Wo, Cin), lambda n, r: (n, 0, 0, 0)),
            wspec((Cin, hidden)), wspec((1, hidden)), wspec((1, hidden)),
            wspec((3, 3, hidden)), wspec((1, hidden)), wspec((1, hidden)),
            wspec((hidden, Cout)), wspec((1, Cout)), wspec((1, Cout)),
        ],
        out_specs=pl.BlockSpec((1, th, Wo, Cout), lambda n, r: (n, r, 0, 0)),
        scratch_shapes=[pltpu.VMEM((th + 2, Wo + 2, hidden), jnp.float32)],
        compiler_params=pltpu.CompilerParams(
            dimension_semantics=("parallel", "parallel"),
            vmem_limit_bytes=32 * 1024 * 1024,   # within v7x 64 MiB physical VMEM
        ),
    )(x_pad,
      p["w_exp"], p["s_exp"], p["b_exp"],
      p["w_dw"], p["s_dw"], p["b_dw"],
      p["w_pw"], p["s_pw"], p["b_pw"])
    return out


# ----------------------------------------------------------------------------
# Parameter construction (deterministic, synthetic). BN is inference-folded.
# ----------------------------------------------------------------------------
def _fold_bn(gamma, beta, mean, var):
    scale = gamma / jnp.sqrt(var + BN_EPS)
    bias = beta - mean * scale
    return scale, bias


def _make_bn(key, c):
    k1, k2, k3, k4 = jax.random.split(key, 4)
    gamma = jax.random.uniform(k1, (c,), jnp.float32, 0.5, 1.5)
    beta = 0.1 * jax.random.normal(k2, (c,), jnp.float32)
    mean = 0.1 * jax.random.normal(k3, (c,), jnp.float32)
    var = jax.random.uniform(k4, (c,), jnp.float32, 0.5, 1.5)
    s, b = _fold_bn(gamma, beta, mean, var)
    return s.reshape(1, c), b.reshape(1, c)          # f32 scale/bias


def make_block_params(key, cin, t, cout):
    hidden = cin * t
    keys = jax.random.split(key, 6)
    s_exp, b_exp = _make_bn(keys[1], hidden)
    s_dw, b_dw = _make_bn(keys[3], hidden)
    s_pw, b_pw = _make_bn(keys[5], cout)
    return dict(
        w_exp=(0.2 * jax.random.normal(keys[0], (cin, hidden),
                                       jnp.float32)).astype(jnp.bfloat16),
        s_exp=s_exp, b_exp=b_exp,
        w_dw=(0.2 * jax.random.normal(keys[2], (3, 3, hidden),
                                      jnp.float32)).astype(jnp.bfloat16),
        s_dw=s_dw, b_dw=b_dw,
        w_pw=(0.2 * jax.random.normal(keys[4], (hidden, cout),
                                      jnp.float32)).astype(jnp.bfloat16),
        s_pw=s_pw, b_pw=b_pw)


def make_bottleneck_params(key, in_channels, t, c, n):
    keys = jax.random.split(key, n)
    params = [make_block_params(keys[0], in_channels, t, c)]
    for i in range(1, n):
        params.append(make_block_params(keys[i], c, t, c))
    return params


# ----------------------------------------------------------------------------
# BottleneckLayer forward (NCHW in/out to match the PyTorch module).
# ----------------------------------------------------------------------------
def bottleneck_layer(x_nchw, params, *, t, c, n, s):
    x = jnp.transpose(x_nchw, (0, 2, 3, 1)).astype(jnp.bfloat16)   # NCHW->NHWC
    cin, stride = x.shape[-1], s
    for i in range(n):
        is_res = (cin == c) and (stride == 1)
        x = inverted_residual_block(x, params[i], stride=stride, is_res=is_res)
        cin, stride = c, 1
    return jnp.transpose(x, (0, 3, 1, 2)).astype(jnp.float32)      # NHWC->NCHW


# ----------------------------------------------------------------------------
if __name__ == "__main__":
    # Small config: BottleneckLayer(in_channels=8, t=4, c=16, n=2, s=2)
    IN_C, T, C, N_BLOCKS, S = 8, 4, 16, 2, 2
    BATCH, H, W = 2, 16, 16

    key = jax.random.PRNGKey(0)
    k_x, k_p = jax.random.split(key)
    x = jax.random.normal(k_x, (BATCH, IN_C, H, W), jnp.float32)   # NCHW input
    params = make_bottleneck_params(k_p, IN_C, T, C, N_BLOCKS)

    fwd = jax.jit(functools.partial(bottleneck_layer, t=T, c=C, n=N_BLOCKS, s=S))
    out = jax.block_until_ready(fwd(x, params))

    expected_shape = (BATCH, C, H // S, W // S)
    assert out.shape == expected_shape, (out.shape, expected_shape)
    assert bool(jnp.all(jnp.isfinite(out)))
    print("KERNEL_OK")
</pallas_src>

<mosaic_0001>
module attributes {stable_mosaic.version = 11 : i64} {
  func.func @_block_kernel(%arg0: i32, %arg1: i32, %arg2: memref<1x10x8x8xbf16, #tpu.memory_space<vmem>>, %arg3: memref<8x32xbf16, #tpu.memory_space<vmem>>, %arg4: memref<1x32xf32, #tpu.memory_space<vmem>>, %arg5: memref<1x32xf32, #tpu.memory_space<vmem>>, %arg6: memref<3x3x32xbf16, #tpu.memory_space<vmem>>, %arg7: memref<1x32xf32, #tpu.memory_space<vmem>>, %arg8: memref<1x32xf32, #tpu.memory_space<vmem>>, %arg9: memref<32x16xbf16, #tpu.memory_space<vmem>>, %arg10: memref<1x16xf32, #tpu.memory_space<vmem>>, %arg11: memref<1x16xf32, #tpu.memory_space<vmem>>, %arg12: memref<1x8x8x16xbf16, #tpu.memory_space<vmem>>, %arg13: memref<10x10x32xf32, #tpu.memory_space<vmem>>) attributes {dimension_semantics = [#tpu.dimension_semantics<parallel>, #tpu.dimension_semantics<parallel>], iteration_bounds = array<i64: 2, 1>, scalar_prefetch = 0 : i64, scratch_operands = 1 : i64, tpu.core_type = #tpu.core_type<tc>, window_params = [{transform_indices = @transform_0, window_bounds = array<i64: 1, 10, 8, 8>}, {pipeline_mode = #tpu.pipeline_mode<synchronous>, transform_indices = @transform_1, window_bounds = array<i64: 8, 32>}, {pipeline_mode = #tpu.pipeline_mode<synchronous>, transform_indices = @transform_2, window_bounds = array<i64: 1, 32>}, {pipeline_mode = #tpu.pipeline_mode<synchronous>, transform_indices = @transform_3, window_bounds = array<i64: 1, 32>}, {pipeline_mode = #tpu.pipeline_mode<synchronous>, transform_indices = @transform_4, window_bounds = array<i64: 3, 3, 32>}, {pipeline_mode = #tpu.pipeline_mode<synchronous>, transform_indices = @transform_5, window_bounds = array<i64: 1, 32>}, {pipeline_mode = #tpu.pipeline_mode<synchronous>, transform_indices = @transform_6, window_bounds = array<i64: 1, 32>}, {pipeline_mode = #tpu.pipeline_mode<synchronous>, transform_indices = @transform_7, window_bounds = array<i64: 32, 16>}, {pipeline_mode = #tpu.pipeline_mode<synchronous>, transform_indices = @transform_8, window_bounds = array<i64: 1, 16>}, {pipeline_mode = #tpu.pipeline_mode<synchronous>, transform_indices = @transform_9, window_bounds = array<i64: 1, 16>}, {transform_indices = @transform_10, window_bounds = array<i64: 1, 8, 8, 16>}]} {
    %cst = arith.constant 0.000000e+00 : f32
    %0 = vector.broadcast %cst : f32 to vector<10x10x32xf32>
    %c0 = arith.constant 0 : index
    %c0_0 = arith.constant 0 : index
    %c0_1 = arith.constant 0 : index
    %1 = vector.load %arg13[%c0, %c0_0, %c0_1] : memref<10x10x32xf32, #tpu.memory_space<vmem>>, vector<10x10x32xf32>
    tpu.vector_store %arg13[%c0, %c0_0, %c0_1], %0 {strides = array<i32>} : memref<10x10x32xf32, #tpu.memory_space<vmem>>, vector<10x10x32xf32>,
    %c8_i32 = arith.constant 8 : i32
    %2 = arith.muli %arg1, %c8_i32 : i32
    %3 = tpu.assume_multiple %2, 8 : i32
    %c0_2 = arith.constant 0 : index
    %4 = arith.index_cast %3 : i32 to index
    %c0_3 = arith.constant 0 : index
    %c0_4 = arith.constant 0 : index
    %5 = vector.load %arg2[%c0_2, %4, %c0_3, %c0_4] : memref<1x10x8x8xbf16, #tpu.memory_space<vmem>>, vector<1x10x8x8xbf16>
    %6 = vector.shape_cast %5 : vector<1x10x8x8xbf16> to vector<80x8xbf16>
    %c0_5 = arith.constant 0 : index
    %c0_6 = arith.constant 0 : index
    %7 = vector.load %arg3[%c0_5, %c0_6] : memref<8x32xbf16, #tpu.memory_space<vmem>>, vector<8x32xbf16>
    %cst_7 = arith.constant dense<0.000000e+00> : vector<80x32xf32>
    %8 = tpu.matmul %6, %7, %cst_7 {dimension_numbers = #tpu.dot_dimension_numbers<[1], [0], [0], [1], [0, 0, 1, 1], [], []>} : vector<80x8xbf16>, vector<8x32xbf16>, vector<80x32xf32> -> vector<80x32xf32>
    %c0_8 = arith.constant 0 : index
    %c0_9 = arith.constant 0 : index
    %9 = vector.load %arg4[%c0_8, %c0_9] : memref<1x32xf32, #tpu.memory_space<vmem>>, vector<1x32xf32>
    %10 = vector.broadcast %9 : vector<1x32xf32> to vector<80x32xf32>
    %11 = arith.mulf %8, %10 : vector<80x32xf32>
    %c0_10 = arith.constant 0 : index
    %c0_11 = arith.constant 0 : index
    %12 = vector.load %arg5[%c0_10, %c0_11] : memref<1x32xf32, #tpu.memory_space<vmem>>, vector<1x32xf32>
    %13 = vector.broadcast %12 : vector<1x32xf32> to vector<80x32xf32>
    %14 = arith.addf %11, %13 : vector<80x32xf32>
    %cst_12 = arith.constant 0.000000e+00 : f32
    %cst_13 = arith.constant 6.000000e+00 : f32
    %15 = vector.broadcast %cst_12 : f32 to vector<80x32xf32>
    %16 = arith.maximumf %15, %14 : vector<80x32xf32>
    %17 = vector.broadcast %cst_13 : f32 to vector<80x32xf32>
    %18 = arith.minimumf %17, %16 : vector<80x32xf32>
    %19 = vector.shape_cast %18 : vector<80x32xf32> to vector<10x8x32xf32>
    %c0_14 = arith.constant 0 : index
    %c1 = arith.constant 1 : index
    %c0_15 = arith.constant 0 : index
    %20 = vector.load %arg13[%c0_14, %c1, %c0_15] : memref<10x10x32xf32, #tpu.memory_space<vmem>>, vector<10x8x32xf32>
    tpu.vector_store %arg13[%c0_14, %c1, %c0_15], %19 {strides = array<i32>} : memref<10x10x32xf32, #tpu.memory_space<vmem>>, vector<10x8x32xf32>,
    %c0_i32 = arith.constant 0 : i32
    %21 = arith.cmpi eq, %arg1, %c0_i32 : i32
    %22 = arith.extui %21 : i1 to i32
    %c0_i32_16 = arith.constant 0 : i32
    %23 = arith.cmpi ne, %22, %c0_i32_16 : i32
    scf.if %23 {
      %cst_90 = arith.constant 0.000000e+00 : f32
      %125 = vector.broadcast %cst_90 : f32 to vector<1x10x32xf32>
      %c0_91 = arith.constant 0 : index
      %c0_92 = arith.constant 0 : index
      %c0_93 = arith.constant 0 : index
      %126 = vector.load %arg13[%c0_91, %c0_92, %c0_93] : memref<10x10x32xf32, #tpu.memory_space<vmem>>, vector<1x10x32xf32>
      tpu.vector_store %arg13[%c0_91, %c0_92, %c0_93], %125 {strides = array<i32>} : memref<10x10x32xf32, #tpu.memory_space<vmem>>, vector<1x10x32xf32>,
    } else {
    }
    %c0_i32_17 = arith.constant 0 : i32
    %24 = arith.cmpi eq, %arg1, %c0_i32_17 : i32
    %25 = arith.extui %24 : i1 to i32
    %c0_i32_18 = arith.constant 0 : i32
    %26 = arith.cmpi ne, %25, %c0_i32_18 : i32
    scf.if %26 {
      %cst_90 = arith.constant 0.000000e+00 : f32
      %125 = vector.broadcast %cst_90 : f32 to vector<1x10x32xf32>
      %c9 = arith.constant 9 : index
      %c0_91 = arith.constant 0 : index
      %c0_92 = arith.constant 0 : index
      %126 = vector.load %arg13[%c9, %c0_91, %c0_92] : memref<10x10x32xf32, #tpu.memory_space<vmem>>, vector<1x10x32xf32>
      tpu.vector_store %arg13[%c9, %c0_91, %c0_92], %125 {strides = array<i32>} : memref<10x10x32xf32, #tpu.memory_space<vmem>>, vector<1x10x32xf32>,
    } else {
    }
    %cst_19 = arith.constant 0.000000e+00 : f32
    %27 = vector.broadcast %cst_19 : f32 to vector<8x8x32xf32>
    %c0_20 = arith.constant 0 : index
    %c0_21 = arith.constant 0 : index
    %c0_22 = arith.constant 0 : index
    %28 = vector.load %arg13[%c0_20, %c0_21, %c0_22] : memref<10x10x32xf32, #tpu.memory_space<vmem>>, vector<8x8x32xf32>
    %c0_23 = arith.constant 0 : index
    %c0_24 = arith.constant 0 : index
    %c0_25 = arith.constant 0 : index
    %29 = vector.load %arg6[%c0_23, %c0_24, %c0_25] : memref<3x3x32xbf16, #tpu.memory_space<vmem>>, vector<1x1x32xbf16>
    %30 = vector.shape_cast %29 : vector<1x1x32xbf16> to vector<32xbf16>
    %31 = arith.extf %30 : vector<32xbf16> to vector<32xf32>
    %32 = vector.shape_cast %31 : vector<32xf32> to vector<1x1x32xf32>
    %33 = vector.broadcast %32 : vector<1x1x32xf32> to vector<8x8x32xf32>
    %34 = arith.mulf %28, %33 : vector<8x8x32xf32>
    %35 = arith.addf %27, %34 : vector<8x8x32xf32>
    %c0_26 = arith.constant 0 : index
    %c1_27 = arith.constant 1 : index
    %c0_28 = arith.constant 0 : index
    %36 = vector.load %arg13[%c0_26, %c1_27, %c0_28] : memref<10x10x32xf32, #tpu.memory_space<vmem>>, vector<8x8x32xf32>
    %c0_29 = arith.constant 0 : index
    %c1_30 = arith.constant 1 : index
    %c0_31 = arith.constant 0 : index
    %37 = vector.load %arg6[%c0_29, %c1_30, %c0_31] : memref<3x3x32xbf16, #tpu.memory_space<vmem>>, vector<1x1x32xbf16>
    %38 = vector.shape_cast %37 : vector<1x1x32xbf16> to vector<32xbf16>
    %39 = arith.extf %38 : vector<32xbf16> to vector<32xf32>
    %40 = vector.shape_cast %39 : vector<32xf32> to vector<1x1x32xf32>
    %41 = vector.broadcast %40 : vector<1x1x32xf32> to vector<8x8x32xf32>
    %42 = arith.mulf %36, %41 : vector<8x8x32xf32>
    %43 = arith.addf %35, %42 : vector<8x8x32xf32>
    %c0_32 = arith.constant 0 : index
    %c2 = arith.constant 2 : index
    %c0_33 = arith.constant 0 : index
    %44 = vector.load %arg13[%c0_32, %c2, %c0_33] : memref<10x10x32xf32, #tpu.memory_space<vmem>>, vector<8x8x32xf32>
    %c0_34 = arith.constant 0 : index
    %c2_35 = arith.constant 2 : index
    %c0_36 = arith.constant 0 : index
    %45 = vector.load %arg6[%c0_34, %c2_35, %c0_36] : memref<3x3x32xbf16, #tpu.memory_space<vmem>>, vector<1x1x32xbf16>
    %46 = vector.shape_cast %45 : vector<1x1x32xbf16> to vector<32xbf16>
    %47 = arith.extf %46 : vector<32xbf16> to vector<32xf32>
    %48 = vector.shape_cast %47 : vector<32xf32> to vector<1x1x32xf32>
    %49 = vector.broadcast %48 : vector<1x1x32xf32> to vector<8x8x32xf32>
    %50 = arith.mulf %44, %49 : vector<8x8x32xf32>
    %51 = arith.addf %43, %50 : vector<8x8x32xf32>
    %c1_37 = arith.constant 1 : index
    %c0_38 = arith.constant 0 : index
    %c0_39 = arith.constant 0 : index
    %52 = vector.load %arg13[%c1_37, %c0_38, %c0_39] : memref<10x10x32xf32, #tpu.memory_space<vmem>>, vector<8x8x32xf32>
    %c1_40 = arith.constant 1 : index
    %c0_41 = arith.constant 0 : index
    %c0_42 = arith.constant 0 : index
    %53 = vector.load %arg6[%c1_40, %c0_41, %c0_42] : memref<3x3x32xbf16, #tpu.memory_space<vmem>>, vector<1x1x32xbf16>
    %54 = vector.shape_cast %53 : vector<1x1x32xbf16> to vector<32xbf16>
    %55 = arith.extf %54 : vector<32xbf16> to vector<32xf32>
    %56 = vector.shape_cast %55 : vector<32xf32> to vector<1x1x32xf32>
    %57 = vector.broadcast %56 : vector<1x1x32xf32> to vector<8x8x32xf32>
    %58 = arith.mulf %52, %57 : vector<8x8x32xf32>
    %59 = arith.addf %51, %58 : vector<8x8x32xf32>
    %c1_43 = arith.constant 1 : index
    %c1_44 = arith.constant 1 : index
    %c0_45 = arith.constant 0 : index
    %60 = vector.load %arg13[%c1_43, %c1_44, %c0_45] : memref<10x10x32xf32, #tpu.memory_space<vmem>>, vector<8x8x32xf32>
    %c1_46 = arith.constant 1 : index
    %c1_47 = arith.constant 1 : index
    %c0_48 = arith.constant 0 : index
    %61 = vector.load %arg6[%c1_46, %c1_47, %c0_48] : memref<3x3x32xbf16, #tpu.memory_space<vmem>>, vector<1x1x32xbf16>
    %62 = vector.shape_cast %61 : vector<1x1x32xbf16> to vector<32xbf16>
    %63 = arith.extf %62 : vector<32xbf16> to vector<32xf32>
    %64 = vector.shape_cast %63 : vector<32xf32> to vector<1x1x32xf32>
    %65 = vector.broadcast %64 : vector<1x1x32xf32> to vector<8x8x32xf32>
    %66 = arith.mulf %60, %65 : vector<8x8x32xf32>
    %67 = arith.addf %59, %66 : vector<8x8x32xf32>
    %c1_49 = arith.constant 1 : index
    %c2_50 = arith.constant 2 : index
    %c0_51 = arith.constant 0 : index
    %68 = vector.load %arg13[%c1_49, %c2_50, %c0_51] : memref<10x10x32xf32, #tpu.memory_space<vmem>>, vector<8x8x32xf32>
    %c1_52 = arith.constant 1 : index
    %c2_53 = arith.constant 2 : index
    %c0_54 = arith.constant 0 : index
    %69 = vector.load %arg6[%c1_52, %c2_53, %c0_54] : memref<3x3x32xbf16, #tpu.memory_space<vmem>>, vector<1x1x32xbf16>
    %70 = vector.shape_cast %69 : vector<1x1x32xbf16> to vector<32xbf16>
    %71 = arith.extf %70 : vector<32xbf16> to vector<32xf32>
    %72 = vector.shape_cast %71 : vector<32xf32> to vector<1x1x32xf32>
    %73 = vector.broadcast %72 : vector<1x1x32xf32> to vector<8x8x32xf32>
    %74 = arith.mulf %68, %73 : vector<8x8x32xf32>
    %75 = arith.addf %67, %74 : vector<8x8x32xf32>
    %c2_55 = arith.constant 2 : index
    %c0_56 = arith.constant 0 : index
    %c0_57 = arith.constant 0 : index
    %76 = vector.load %arg13[%c2_55, %c0_56, %c0_57] : memref<10x10x32xf32, #tpu.memory_space<vmem>>, vector<8x8x32xf32>
    %c2_58 = arith.constant 2 : index
    %c0_59 = arith.constant 0 : index
    %c0_60 = arith.constant 0 : index
    %77 = vector.load %arg6[%c2_58, %c0_59, %c0_60] : memref<3x3x32xbf16, #tpu.memory_space<vmem>>, vector<1x1x32xbf16>
    %78 = vector.shape_cast %77 : vector<1x1x32xbf16> to vector<32xbf16>
    %79 = arith.extf %78 : vector<32xbf16> to vector<32xf32>
    %80 = vector.shape_cast %79 : vector<32xf32> to vector<1x1x32xf32>
    %81 = vector.broadcast %80 : vector<1x1x32xf32> to vector<8x8x32xf32>
    %82 = arith.mulf %76, %81 : vector<8x8x32xf32>
    %83 = arith.addf %75, %82 : vector<8x8x32xf32>
    %c2_61 = arith.constant 2 : index
    %c1_62 = arith.constant 1 : index
    %c0_63 = arith.constant 0 : index
    %84 = vector.load %arg13[%c2_61, %c1_62, %c0_63] : memref<10x10x32xf32, #tpu.memory_space<vmem>>, vector<8x8x32xf32>
    %c2_64 = arith.constant 2 : index
    %c1_65 = arith.constant 1 : index
    %c0_66 = arith.constant 0 : index
    %85 = vector.load %arg6[%c2_64, %c1_65, %c0_66] : memref<3x3x32xbf16, #tpu.memory_space<vmem>>, vector<1x1x32xbf16>
    %86 = vector.shape_cast %85 : vector<1x1x32xbf16> to vector<32xbf16>
    %87 = arith.extf %86 : vector<32xbf16> to vector<32xf32>
    %88 = vector.shape_cast %87 : vector<32xf32> to vector<1x1x32xf32>
    %89 = vector.broadcast %88 : vector<1x1x32xf32> to vector<8x8x32xf32>
    %90 = arith.mulf %84, %89 : vector<8x8x32xf32>
    %91 = arith.addf %83, %90 : vector<8x8x32xf32>
    %c2_67 = arith.constant 2 : index
    %c2_68 = arith.constant 2 : index
    %c0_69 = arith.constant 0 : index
    %92 = vector.load %arg13[%c2_67, %c2_68, %c0_69] : memref<10x10x32xf32, #tpu.memory_space<vmem>>, vector<8x8x32xf32>
    %c2_70 = arith.constant 2 : index
    %c2_71 = arith.constant 2 : index
    %c0_72 = arith.constant 0 : index
    %93 = vector.load %arg6[%c2_70, %c2_71, %c0_72] : memref<3x3x32xbf16, #tpu.memory_space<vmem>>, vector<1x1x32xbf16>
    %94 = vector.shape_cast %93 : vector<1x1x32xbf16> to vector<32xbf16>
    %95 = arith.extf %94 : vector<32xbf16> to vector<32xf32>
    %96 = vector.shape_cast %95 : vector<32xf32> to vector<1x1x32xf32>
    %97 = vector.broadcast %96 : vector<1x1x32xf32> to vector<8x8x32xf32>
    %98 = arith.mulf %92, %97 : vector<8x8x32xf32>
    %99 = arith.addf %91, %98 : vector<8x8x32xf32>
    %c0_73 = arith.constant 0 : index
    %c0_74 = arith.constant 0 : index
    %100 = vector.load %arg7[%c0_73, %c0_74] : memref<1x32xf32, #tpu.memory_space<vmem>>, vector<1x32xf32>
    %101 = vector.shape_cast %100 : vector<1x32xf32> to vector<1x1x32xf32>
    %102 = vector.broadcast %101 : vector<1x1x32xf32> to vector<8x8x32xf32>
    %103 = arith.mulf %99, %102 : vector<8x8x32xf32>
    %c0_75 = arith.constant 0 : index
    %c0_76 = arith.constant 0 : index
    %104 = vector.load %arg8[%c0_75, %c0_76] : memref<1x32xf32, #tpu.memory_space<vmem>>, vector<1x32xf32>
    %105 = vector.shape_cast %104 : vector<1x32xf32> to vector<1x1x32xf32>
    %106 = vector.broadcast %105 : vector<1x1x32xf32> to vector<8x8x32xf32>
    %107 = arith.addf %103, %106 : vector<8x8x32xf32>
    %cst_77 = arith.constant 0.000000e+00 : f32
    %cst_78 = arith.constant 6.000000e+00 : f32
    %108 = vector.broadcast %cst_77 : f32 to vector<8x8x32xf32>
    %109 = arith.maximumf %108, %107 : vector<8x8x32xf32>
    %110 = vector.broadcast %cst_78 : f32 to vector<8x8x32xf32>
    %111 = arith.minimumf %110, %109 : vector<8x8x32xf32>
    %112 = vector.shape_cast %111 : vector<8x8x32xf32> to vector<64x32xf32>
    %113 = arith.truncf %112 : vector<64x32xf32> to vector<64x32xbf16>
    %c0_79 = arith.constant 0 : index
    %c0_80 = arith.constant 0 : index
    %114 = vector.load %arg9[%c0_79, %c0_80] : memref<32x16xbf16, #tpu.memory_space<vmem>>, vector<32x16xbf16>
    %cst_81 = arith.constant dense<0.000000e+00> : vector<64x16xf32>
    %115 = tpu.matmul %113, %114, %cst_81 {dimension_numbers = #tpu.dot_dimension_numbers<[1], [0], [0], [1], [0, 0, 1, 1], [], []>} : vector<64x32xbf16>, vector<32x16xbf16>, vector<64x16xf32> -> vector<64x16xf32>
    %c0_82 = arith.constant 0 : index
    %c0_83 = arith.constant 0 : index
    %116 = vector.load %arg10[%c0_82, %c0_83] : memref<1x16xf32, #tpu.memory_space<vmem>>, vector<1x16xf32>
    %117 = vector.broadcast %116 : vector<1x16xf32> to vector<64x16xf32>
    %118 = arith.mulf %115, %117 : vector<64x16xf32>
    %c0_84 = arith.constant 0 : index
    %c0_85 = arith.constant 0 : index
    %119 = vector.load %arg11[%c0_84, %c0_85] : memref<1x16xf32, #tpu.memory_space<vmem>>, vector<1x16xf32>
    %120 = vector.broadcast %119 : vector<1x16xf32> to vector<64x16xf32>
    %121 = arith.addf %118, %120 : vector<64x16xf32>
    %122 = vector.shape_cast %121 : vector<64x16xf32> to vector<1x8x8x16xf32>
    %123 = arith.truncf %122 : vector<1x8x8x16xf32> to vector<1x8x8x16xbf16>
    %c0_86 = arith.constant 0 : index
    %c0_87 = arith.constant 0 : index
    %c0_88 = arith.constant 0 : index
    %c0_89 = arith.constant 0 : index
    %124 = vector.load %arg12[%c0_86, %c0_87, %c0_88, %c0_89] : memref<1x8x8x16xbf16, #tpu.memory_space<vmem>>, vector<1x8x8x16xbf16>
    tpu.vector_store %arg12[%c0_86, %c0_87, %c0_88, %c0_89], %123 {strides = array<i32>} : memref<1x8x8x16xbf16, #tpu.memory_space<vmem>>, vector<1x8x8x16xbf16>,
    return
  }
  func.func @transform_0(%arg0: i32, %arg1: i32) -> (i32, i32, i32, i32) {
    %c0_i32 = arith.constant 0 : i32
    %c0_i32_0 = arith.constant 0 : i32
    %c0_i32_1 = arith.constant 0 : i32
    %c0_i32_2 = arith.constant 0 : i32
    return %arg0, %c0_i32, %c0_i32_0, %c0_i32_1 : i32, i32, i32, i32
  }
  func.func @transform_1(%arg0: i32, %arg1: i32) -> (i32, i32) {
    %c0_i32 = arith.constant 0 : i32
    %c0_i32_0 = arith.constant 0 : i32
    %c0_i32_1 = arith.constant 0 : i32
    return %c0_i32, %c0_i32_0 : i32, i32
  }
  func.func @transform_2(%arg0: i32, %arg1: i32) -> (i32, i32) {
    %c0_i32 = arith.constant 0 : i32
    %c0_i32_0 = arith.constant 0 : i32
    %c0_i32_1 = arith.constant 0 : i32
    return %c0_i32, %c0_i32_0 : i32, i32
  }
  func.func @transform_3(%arg0: i32, %arg1: i32) -> (i32, i32) {
    %c0_i32 = arith.constant 0 : i32
    %c0_i32_0 = arith.constant 0 : i32
    %c0_i32_1 = arith.constant 0 : i32
    return %c0_i32, %c0_i32_0 : i32, i32
  }
  func.func @transform_4(%arg0: i32, %arg1: i32) -> (i32, i32, i32) {
    %c0_i32 = arith.constant 0 : i32
    %c0_i32_0 = arith.constant 0 : i32
    %c0_i32_1 = arith.constant 0 : i32
    %c0_i32_2 = arith.constant 0 : i32
    return %c0_i32, %c0_i32_0, %c0_i32_1 : i32, i32, i32
  }
  func.func @transform_5(%arg0: i32, %arg1: i32) -> (i32, i32) {
    %c0_i32 = arith.constant 0 : i32
    %c0_i32_0 = arith.constant 0 : i32
    %c0_i32_1 = arith.constant 0 : i32
    return %c0_i32, %c0_i32_0 : i32, i32
  }
  func.func @transform_6(%arg0: i32, %arg1: i32) -> (i32, i32) {
    %c0_i32 = arith.constant 0 : i32
    %c0_i32_0 = arith.constant 0 : i32
    %c0_i32_1 = arith.constant 0 : i32
    return %c0_i32, %c0_i32_0 : i32, i32
  }
  func.func @transform_7(%arg0: i32, %arg1: i32) -> (i32, i32) {
    %c0_i32 = arith.constant 0 : i32
    %c0_i32_0 = arith.constant 0 : i32
    %c0_i32_1 = arith.constant 0 : i32
    return %c0_i32, %c0_i32_0 : i32, i32
  }
  func.func @transform_8(%arg0: i32, %arg1: i32) -> (i32, i32) {
    %c0_i32 = arith.constant 0 : i32
    %c0_i32_0 = arith.constant 0 : i32
    %c0_i32_1 = arith.constant 0 : i32
    return %c0_i32, %c0_i32_0 : i32, i32
  }
  func.func @transform_9(%arg0: i32, %arg1: i32) -> (i32, i32) {
    %c0_i32 = arith.constant 0 : i32
    %c0_i32_0 = arith.constant 0 : i32
    %c0_i32_1 = arith.constant 0 : i32
    return %c0_i32, %c0_i32_0 : i32, i32
  }
  func.func @transform_10(%arg0: i32, %arg1: i32) -> (i32, i32, i32, i32) {
    %c0_i32 = arith.constant 0 : i32
    %c0_i32_0 = arith.constant 0 : i32
    %c0_i32_1 = arith.constant 0 : i32
    return %arg0, %arg1, %c0_i32, %c0_i32_0 : i32, i32, i32, i32
  }
}

module attributes {stable_mosaic.version = 11 : i64} {
  func.func @_block_kernel(%arg0: i32, %arg1: i32, %arg2: memref<1x10x8x16xbf16, #tpu.memory_space<vmem>>, %arg3: memref<16x64xbf16, #tpu.memory_space<vmem>>, %arg4: memref<1x64xf32, #tpu.memory_space<vmem>>, %arg5: memref<1x64xf32, #tpu.memory_space<vmem>>, %arg6: memref<3x3x64xbf16, #tpu.memory_space<vmem>>, %arg7: memref<1x64xf32, #tpu.memory_space<vmem>>, %arg8: memref<1x64xf32, #tpu.memory_space<vmem>>, %arg9: memref<64x16xbf16, #tpu.memory_space<vmem>>, %arg10: memref<1x16xf32, #tpu.memory_space<vmem>>, %arg11: memref<1x16xf32, #tpu.memory_space<vmem>>, %arg12: memref<1x8x8x16xbf16, #tpu.memory_space<vmem>>, %arg13: memref<10x10x64xf32, #tpu.memory_space<vmem>>) attributes {dimension_semantics = [#tpu.dimension_semantics<parallel>, #tpu.dimension_semantics<parallel>], iteration_bounds = array<i64: 2, 1>, scalar_prefetch = 0 : i64, scratch_operands = 1 : i64, tpu.core_type = #tpu.core_type<tc>, window_params = [{transform_indices = @transform_0, window_bounds = array<i64: 1, 10, 8, 16>}, {pipeline_mode = #tpu.pipeline_mode<synchronous>, transform_indices = @transform_1, window_bounds = array<i64: 16, 64>}, {pipeline_mode = #tpu.pipeline_mode<synchronous>, transform_indices = @transform_2, window_bounds = array<i64: 1, 64>}, {pipeline_mode = #tpu.pipeline_mode<synchronous>, transform_indices = @transform_3, window_bounds = array<i64: 1, 64>}, {pipeline_mode = #tpu.pipeline_mode<synchronous>, transform_indices = @transform_4, window_bounds = array<i64: 3, 3, 64>}, {pipeline_mode = #tpu.pipeline_mode<synchronous>, transform_indices = @transform_5, window_bounds = array<i64: 1, 64>}, {pipeline_mode = #tpu.pipeline_mode<synchronous>, transform_indices = @transform_6, window_bounds = array<i64: 1, 64>}, {pipeline_mode = #tpu.pipeline_mode<synchronous>, transform_indices = @transform_7, window_bounds = array<i64: 64, 16>}, {pipeline_mode = #tpu.pipeline_mode<synchronous>, transform_indices = @transform_8, window_bounds = array<i64: 1, 16>}, {pipeline_mode = #tpu.pipeline_mode<synchronous>, transform_indices = @transform_9, window_bounds = array<i64: 1, 16>}, {transform_indices = @transform_10, window_bounds = array<i64: 1, 8, 8, 16>}]} {
    %cst = arith.constant 0.000000e+00 : f32
    %0 = vector.broadcast %cst : f32 to vector<10x10x64xf32>
    %c0 = arith.constant 0 : index
    %c0_0 = arith.constant 0 : index
    %c0_1 = arith.constant 0 : index
    %1 = vector.load %arg13[%c0, %c0_0, %c0_1] : memref<10x10x64xf32, #tpu.memory_space<vmem>>, vector<10x10x64xf32>
    tpu.vector_store %arg13[%c0, %c0_0, %c0_1], %0 {strides = array<i32>} : memref<10x10x64xf32, #tpu.memory_space<vmem>>, vector<10x10x64xf32>,
    %c8_i32 = arith.constant 8 : i32
    %2 = arith.muli %arg1, %c8_i32 : i32
    %3 = tpu.assume_multiple %2, 8 : i32
    %c0_2 = arith.constant 0 : index
    %4 = arith.index_cast %3 : i32 to index
    %c0_3 = arith.constant 0 : index
    %c0_4 = arith.constant 0 : index
    %5 = vector.load %arg2[%c0_2, %4, %c0_3, %c0_4] : memref<1x10x8x16xbf16, #tpu.memory_space<vmem>>, vector<1x10x8x16xbf16>
    %6 = vector.shape_cast %5 : vector<1x10x8x16xbf16> to vector<80x16xbf16>
    %c0_5 = arith.constant 0 : index
    %c0_6 = arith.constant 0 : index
    %7 = vector.load %arg3[%c0_5, %c0_6] : memref<16x64xbf16, #tpu.memory_space<vmem>>, vector<16x64xbf16>
    %cst_7 = arith.constant dense<0.000000e+00> : vector<80x64xf32>
    %8 = tpu.matmul %6, %7, %cst_7 {dimension_numbers = #tpu.dot_dimension_numbers<[1], [0], [0], [1], [0, 0, 1, 1], [], []>} : vector<80x16xbf16>, vector<16x64xbf16>, vector<80x64xf32> -> vector<80x64xf32>
    %c0_8 = arith.constant 0 : index
    %c0_9 = arith.constant 0 : index
    %9 = vector.load %arg4[%c0_8, %c0_9] : memref<1x64xf32, #tpu.memory_space<vmem>>, vector<1x64xf32>
    %10 = vector.broadcast %9 : vector<1x64xf32> to vector<80x64xf32>
    %11 = arith.mulf %8, %10 : vector<80x64xf32>
    %c0_10 = arith.constant 0 : index
    %c0_11 = arith.constant 0 : index
    %12 = vector.load %arg5[%c0_10, %c0_11] : memref<1x64xf32, #tpu.memory_space<vmem>>, vector<1x64xf32>
    %13 = vector.broadcast %12 : vector<1x64xf32> to vector<80x64xf32>
    %14 = arith.addf %11, %13 : vector<80x64xf32>
    %cst_12 = arith.constant 0.000000e+00 : f32
    %cst_13 = arith.constant 6.000000e+00 : f32
    %15 = vector.broadcast %cst_12 : f32 to vector<80x64xf32>
    %16 = arith.maximumf %15, %14 : vector<80x64xf32>
    %17 = vector.broadcast %cst_13 : f32 to vector<80x64xf32>
    %18 = arith.minimumf %17, %16 : vector<80x64xf32>
    %19 = vector.shape_cast %18 : vector<80x64xf32> to vector<10x8x64xf32>
    %c0_14 = arith.constant 0 : index
    %c1 = arith.constant 1 : index
    %c0_15 = arith.constant 0 : index
    %20 = vector.load %arg13[%c0_14, %c1, %c0_15] : memref<10x10x64xf32, #tpu.memory_space<vmem>>, vector<10x8x64xf32>
    tpu.vector_store %arg13[%c0_14, %c1, %c0_15], %19 {strides = array<i32>} : memref<10x10x64xf32, #tpu.memory_space<vmem>>, vector<10x8x64xf32>,
    %c0_i32 = arith.constant 0 : i32
    %21 = arith.cmpi eq, %arg1, %c0_i32 : i32
    %22 = arith.extui %21 : i1 to i32
    %c0_i32_16 = arith.constant 0 : i32
    %23 = arith.cmpi ne, %22, %c0_i32_16 : i32
    scf.if %23 {
      %cst_93 = arith.constant 0.000000e+00 : f32
      %131 = vector.broadcast %cst_93 : f32 to vector<1x10x64xf32>
      %c0_94 = arith.constant 0 : index
      %c0_95 = arith.constant 0 : index
      %c0_96 = arith.constant 0 : index
      %132 = vector.load %arg13[%c0_94, %c0_95, %c0_96] : memref<10x10x64xf32, #tpu.memory_space<vmem>>, vector<1x10x64xf32>
      tpu.vector_store %arg13[%c0_94, %c0_95, %c0_96], %131 {strides = array<i32>} : memref<10x10x64xf32, #tpu.memory_space<vmem>>, vector<1x10x64xf32>,
    } else {
    }
    %c0_i32_17 = arith.constant 0 : i32
    %24 = arith.cmpi eq, %arg1, %c0_i32_17 : i32
    %25 = arith.extui %24 : i1 to i32
    %c0_i32_18 = arith.constant 0 : i32
    %26 = arith.cmpi ne, %25, %c0_i32_18 : i32
    scf.if %26 {
      %cst_93 = arith.constant 0.000000e+00 : f32
      %131 = vector.broadcast %cst_93 : f32 to vector<1x10x64xf32>
      %c9 = arith.constant 9 : index
      %c0_94 = arith.constant 0 : index
      %c0_95 = arith.constant 0 : index
      %132 = vector.load %arg13[%c9, %c0_94, %c0_95] : memref<10x10x64xf32, #tpu.memory_space<vmem>>, vector<1x10x64xf32>
      tpu.vector_store %arg13[%c9, %c0_94, %c0_95], %131 {strides = array<i32>} : memref<10x10x64xf32, #tpu.memory_space<vmem>>, vector<1x10x64xf32>,
    } else {
    }
    %cst_19 = arith.constant 0.000000e+00 : f32
    %27 = vector.broadcast %cst_19 : f32 to vector<8x8x64xf32>
    %c0_20 = arith.constant 0 : index
    %c0_21 = arith.constant 0 : index
    %c0_22 = arith.constant 0 : index
    %28 = vector.load %arg13[%c0_20, %c0_21, %c0_22] : memref<10x10x64xf32, #tpu.memory_space<vmem>>, vector<8x8x64xf32>
    %c0_23 = arith.constant 0 : index
    %c0_24 = arith.constant 0 : index
    %c0_25 = arith.constant 0 : index
    %29 = vector.load %arg6[%c0_23, %c0_24, %c0_25] : memref<3x3x64xbf16, #tpu.memory_space<vmem>>, vector<1x1x64xbf16>
    %30 = vector.shape_cast %29 : vector<1x1x64xbf16> to vector<64xbf16>
    %31 = arith.extf %30 : vector<64xbf16> to vector<64xf32>
    %32 = vector.shape_cast %31 : vector<64xf32> to vector<1x1x64xf32>
    %33 = vector.broadcast %32 : vector<1x1x64xf32> to vector<8x8x64xf32>
    %34 = arith.mulf %28, %33 : vector<8x8x64xf32>
    %35 = arith.addf %27, %34 : vector<8x8x64xf32>
    %c0_26 = arith.constant 0 : index
    %c1_27 = arith.constant 1 : index
    %c0_28 = arith.constant 0 : index
    %36 = vector.load %arg13[%c0_26, %c1_27, %c0_28] : memref<10x10x64xf32, #tpu.memory_space<vmem>>, vector<8x8x64xf32>
    %c0_29 = arith.constant 0 : index
    %c1_30 = arith.constant 1 : index
    %c0_31 = arith.constant 0 : index
    %37 = vector.load %arg6[%c0_29, %c1_30, %c0_31] : memref<3x3x64xbf16, #tpu.memory_space<vmem>>, vector<1x1x64xbf16>
    %38 = vector.shape_cast %37 : vector<1x1x64xbf16> to vector<64xbf16>
    %39 = arith.extf %38 : vector<64xbf16> to vector<64xf32>
    %40 = vector.shape_cast %39 : vector<64xf32> to vector<1x1x64xf32>
    %41 = vector.broadcast %40 : vector<1x1x64xf32> to vector<8x8x64xf32>
    %42 = arith.mulf %36, %41 : vector<8x8x64xf32>
    %43 = arith.addf %35, %42 : vector<8x8x64xf32>
    %c0_32 = arith.constant 0 : index
    %c2 = arith.constant 2 : index
    %c0_33 = arith.constant 0 : index
    %44 = vector.load %arg13[%c0_32, %c2, %c0_33] : memref<10x10x64xf32, #tpu.memory_space<vmem>>, vector<8x8x64xf32>
    %c0_34 = arith.constant 0 : index
    %c2_35 = arith.constant 2 : index
    %c0_36 = arith.constant 0 : index
    %45 = vector.load %arg6[%c0_34, %c2_35, %c0_36] : memref<3x3x64xbf16, #tpu.memory_space<vmem>>, vector<1x1x64xbf16>
    %46 = vector.shape_cast %45 : vector<1x1x64xbf16> to vector<64xbf16>
    %47 = arith.extf %46 : vector<64xbf16> to vector<64xf32>
    %48 = vector.shape_cast %47 : vector<64xf32> to vector<1x1x64xf32>
    %49 = vector.broadcast %48 : vector<1x1x64xf32> to vector<8x8x64xf32>
    %50 = arith.mulf %44, %49 : vector<8x8x64xf32>
    %51 = arith.addf %43, %50 : vector<8x8x64xf32>
    %c1_37 = arith.constant 1 : index
    %c0_38 = arith.constant 0 : index
    %c0_39 = arith.constant 0 : index
    %52 = vector.load %arg13[%c1_37, %c0_38, %c0_39] : memref<10x10x64xf32, #tpu.memory_space<vmem>>, vector<8x8x64xf32>
    %c1_40 = arith.constant 1 : index
    %c0_41 = arith.constant 0 : index
    %c0_42 = arith.constant 0 : index
    %53 = vector.load %arg6[%c1_40, %c0_41, %c0_42] : memref<3x3x64xbf16, #tpu.memory_space<vmem>>, vector<1x1x64xbf16>
    %54 = vector.shape_cast %53 : vector<1x1x64xbf16> to vector<64xbf16>
    %55 = arith.extf %54 : vector<64xbf16> to vector<64xf32>
    %56 = vector.shape_cast %55 : vector<64xf32> to vector<1x1x64xf32>
    %57 = vector.broadcast %56 : vector<1x1x64xf32> to vector<8x8x64xf32>
    %58 = arith.mulf %52, %57 : vector<8x8x64xf32>
    %59 = arith.addf %51, %58 : vector<8x8x64xf32>
    %c1_43 = arith.constant 1 : index
    %c1_44 = arith.constant 1 : index
    %c0_45 = arith.constant 0 : index
    %60 = vector.load %arg13[%c1_43, %c1_44, %c0_45] : memref<10x10x64xf32, #tpu.memory_space<vmem>>, vector<8x8x64xf32>
    %c1_46 = arith.constant 1 : index
    %c1_47 = arith.constant 1 : index
    %c0_48 = arith.constant 0 : index
    %61 = vector.load %arg6[%c1_46, %c1_47, %c0_48] : memref<3x3x64xbf16, #tpu.memory_space<vmem>>, vector<1x1x64xbf16>
    %62 = vector.shape_cast %61 : vector<1x1x64xbf16> to vector<64xbf16>
    %63 = arith.extf %62 : vector<64xbf16> to vector<64xf32>
    %64 = vector.shape_cast %63 : vector<64xf32> to vector<1x1x64xf32>
    %65 = vector.broadcast %64 : vector<1x1x64xf32> to vector<8x8x64xf32>
    %66 = arith.mulf %60, %65 : vector<8x8x64xf32>
    %67 = arith.addf %59, %66 : vector<8x8x64xf32>
    %c1_49 = arith.constant 1 : index
    %c2_50 = arith.constant 2 : index
    %c0_51 = arith.constant 0 : index
    %68 = vector.load %arg13[%c1_49, %c2_50, %c0_51] : memref<10x10x64xf32, #tpu.memory_space<vmem>>, vector<8x8x64xf32>
    %c1_52 = arith.constant 1 : index
    %c2_53 = arith.constant 2 : index
    %c0_54 = arith.constant 0 : index
    %69 = vector.load %arg6[%c1_52, %c2_53, %c0_54] : memref<3x3x64xbf16, #tpu.memory_space<vmem>>, vector<1x1x64xbf16>
    %70 = vector.shape_cast %69 : vector<1x1x64xbf16> to vector<64xbf16>
    %71 = arith.extf %70 : vector<64xbf16> to vector<64xf32>
    %72 = vector.shape_cast %71 : vector<64xf32> to vector<1x1x64xf32>
    %73 = vector.broadcast %72 : vector<1x1x64xf32> to vector<8x8x64xf32>
    %74 = arith.mulf %68, %73 : vector<8x8x64xf32>
    %75 = arith.addf %67, %74 : vector<8x8x64xf32>
    %c2_55 = arith.constant 2 : index
    %c0_56 = arith.constant 0 : index
    %c0_57 = arith.constant 0 : index
    %76 = vector.load %arg13[%c2_55, %c0_56, %c0_57] : memref<10x10x64xf32, #tpu.memory_space<vmem>>, vector<8x8x64xf32>
    %c2_58 = arith.constant 2 : index
    %c0_59 = arith.constant 0 : index
    %c0_60 = arith.constant 0 : index
    %77 = vector.load %arg6[%c2_58, %c0_59, %c0_60] : memref<3x3x64xbf16, #tpu.memory_space<vmem>>, vector<1x1x64xbf16>
    %78 = vector.shape_cast %77 : vector<1x1x64xbf16> to vector<64xbf16>
    %79 = arith.extf %78 : vector<64xbf16> to vector<64xf32>
    %80 = vector.shape_cast %79 : vector<64xf32> to vector<1x1x64xf32>
    %81 = vector.broadcast %80 : vector<1x1x64xf32> to vector<8x8x64xf32>
    %82 = arith.mulf %76, %81 : vector<8x8x64xf32>
    %83 = arith.addf %75, %82 : vector<8x8x64xf32>
    %c2_61 = arith.constant 2 : index
    %c1_62 = arith.constant 1 : index
    %c0_63 = arith.constant 0 : index
    %84 = vector.load %arg13[%c2_61, %c1_62, %c0_63] : memref<10x10x64xf32, #tpu.memory_space<vmem>>, vector<8x8x64xf32>
    %c2_64 = arith.constant 2 : index
    %c1_65 = arith.constant 1 : index
    %c0_66 = arith.constant 0 : index
    %85 = vector.load %arg6[%c2_64, %c1_65, %c0_66] : memref<3x3x64xbf16, #tpu.memory_space<vmem>>, vector<1x1x64xbf16>
    %86 = vector.shape_cast %85 : vector<1x1x64xbf16> to vector<64xbf16>
    %87 = arith.extf %86 : vector<64xbf16> to vector<64xf32>
    %88 = vector.shape_cast %87 : vector<64xf32> to vector<1x1x64xf32>
    %89 = vector.broadcast %88 : vector<1x1x64xf32> to vector<8x8x64xf32>
    %90 = arith.mulf %84, %89 : vector<8x8x64xf32>
    %91 = arith.addf %83, %90 : vector<8x8x64xf32>
    %c2_67 = arith.constant 2 : index
    %c2_68 = arith.constant 2 : index
    %c0_69 = arith.constant 0 : index
    %92 = vector.load %arg13[%c2_67, %c2_68, %c0_69] : memref<10x10x64xf32, #tpu.memory_space<vmem>>, vector<8x8x64xf32>
    %c2_70 = arith.constant 2 : index
    %c2_71 = arith.constant 2 : index
    %c0_72 = arith.constant 0 : index
    %93 = vector.load %arg6[%c2_70, %c2_71, %c0_72] : memref<3x3x64xbf16, #tpu.memory_space<vmem>>, vector<1x1x64xbf16>
    %94 = vector.shape_cast %93 : vector<1x1x64xbf16> to vector<64xbf16>
    %95 = arith.extf %94 : vector<64xbf16> to vector<64xf32>
    %96 = vector.shape_cast %95 : vector<64xf32> to vector<1x1x64xf32>
    %97 = vector.broadcast %96 : vector<1x1x64xf32> to vector<8x8x64xf32>
    %98 = arith.mulf %92, %97 : vector<8x8x64xf32>
    %99 = arith.addf %91, %98 : vector<8x8x64xf32>
    %c0_73 = arith.constant 0 : index
    %c0_74 = arith.constant 0 : index
    %100 = vector.load %arg7[%c0_73, %c0_74] : memref<1x64xf32, #tpu.memory_space<vmem>>, vector<1x64xf32>
    %101 = vector.shape_cast %100 : vector<1x64xf32> to vector<1x1x64xf32>
    %102 = vector.broadcast %101 : vector<1x1x64xf32> to vector<8x8x64xf32>
    %103 = arith.mulf %99, %102 : vector<8x8x64xf32>
    %c0_75 = arith.constant 0 : index
    %c0_76 = arith.constant 0 : index
    %104 = vector.load %arg8[%c0_75, %c0_76] : memref<1x64xf32, #tpu.memory_space<vmem>>, vector<1x64xf32>
    %105 = vector.shape_cast %104 : vector<1x64xf32> to vector<1x1x64xf32>
    %106 = vector.broadcast %105 : vector<1x1x64xf32> to vector<8x8x64xf32>
    %107 = arith.addf %103, %106 : vector<8x8x64xf32>
    %cst_77 = arith.constant 0.000000e+00 : f32
    %cst_78 = arith.constant 6.000000e+00 : f32
    %108 = vector.broadcast %cst_77 : f32 to vector<8x8x64xf32>
    %109 = arith.maximumf %108, %107 : vector<8x8x64xf32>
    %110 = vector.broadcast %cst_78 : f32 to vector<8x8x64xf32>
    %111 = arith.minimumf %110, %109 : vector<8x8x64xf32>
    %112 = vector.shape_cast %111 : vector<8x8x64xf32> to vector<64x64xf32>
    %113 = arith.truncf %112 : vector<64x64xf32> to vector<64x64xbf16>
    %c0_79 = arith.constant 0 : index
    %c0_80 = arith.constant 0 : index
    %114 = vector.load %arg9[%c0_79, %c0_80] : memref<64x16xbf16, #tpu.memory_space<vmem>>, vector<64x16xbf16>
    %cst_81 = arith.constant dense<0.000000e+00> : vector<64x16xf32>
    %115 = tpu.matmul %113, %114, %cst_81 {dimension_numbers = #tpu.dot_dimension_numbers<[1], [0], [0], [1], [0, 0, 1, 1], [], []>} : vector<64x64xbf16>, vector<64x16xbf16>, vector<64x16xf32> -> vector<64x16xf32>
    %c0_82 = arith.constant 0 : index
    %c0_83 = arith.constant 0 : index
    %116 = vector.load %arg10[%c0_82, %c0_83] : memref<1x16xf32, #tpu.memory_space<vmem>>, vector<1x16xf32>
    %117 = vector.broadcast %116 : vector<1x16xf32> to vector<64x16xf32>
    %118 = arith.mulf %115, %117 : vector<64x16xf32>
    %c0_84 = arith.constant 0 : index
    %c0_85 = arith.constant 0 : index
    %119 = vector.load %arg11[%c0_84, %c0_85] : memref<1x16xf32, #tpu.memory_space<vmem>>, vector<1x16xf32>
    %120 = vector.broadcast %119 : vector<1x16xf32> to vector<64x16xf32>
    %121 = arith.addf %118, %120 : vector<64x16xf32>
    %c1_i32 = arith.constant 1 : i32
    %122 = arith.addi %3, %c1_i32 : i32
    %c0_86 = arith.constant 0 : index
    %123 = arith.index_cast %122 : i32 to index
    %c0_87 = arith.constant 0 : index
    %c0_88 = arith.constant 0 : index
    %124 = vector.load %arg2[%c0_86, %123, %c0_87, %c0_88] : memref<1x10x8x16xbf16, #tpu.memory_space<vmem>>, vector<1x8x8x16xbf16>
    %125 = arith.extf %124 : vector<1x8x8x16xbf16> to vector<1x8x8x16xf32>
    %126 = vector.shape_cast %125 : vector<1x8x8x16xf32> to vector<64x16xf32>
    %127 = arith.addf %121, %126 : vector<64x16xf32>
    %128 = vector.shape_cast %127 : vector<64x16xf32> to vector<1x8x8x16xf32>
    %129 = arith.truncf %128 : vector<1x8x8x16xf32> to vector<1x8x8x16xbf16>
    %c0_89 = arith.constant 0 : index
    %c0_90 = arith.constant 0 : index
    %c0_91 = arith.constant 0 : index
    %c0_92 = arith.constant 0 : index
    %130 = vector.load %arg12[%c0_89, %c0_90, %c0_91, %c0_92] : memref<1x8x8x16xbf16, #tpu.memory_space<vmem>>, vector<1x8x8x16xbf16>
    tpu.vector_store %arg12[%c0_89, %c0_90, %c0_91, %c0_92], %129 {strides = array<i32>} : memref<1x8x8x16xbf16, #tpu.memory_space<vmem>>, vector<1x8x8x16xbf16>,
    return
  }
  func.func @transform_0(%arg0: i32, %arg1: i32) -> (i32, i32, i32, i32) {
    %c0_i32 = arith.constant 0 : i32
    %c0_i32_0 = arith.constant 0 : i32
    %c0_i32_1 = arith.constant 0 : i32
    %c0_i32_2 = arith.constant 0 : i32
    return %arg0, %c0_i32, %c0_i32_0, %c0_i32_1 : i32, i32, i32, i32
  }
  func.func @transform_1(%arg0: i32, %arg1: i32) -> (i32, i32) {
    %c0_i32 = arith.constant 0 : i32
    %c0_i32_0 = arith.constant 0 : i32
    %c0_i32_1 = arith.constant 0 : i32
    return %c0_i32, %c0_i32_0 : i32, i32
  }
  func.func @transform_2(%arg0: i32, %arg1: i32) -> (i32, i32) {
    %c0_i32 = arith.constant 0 : i32
    %c0_i32_0 = arith.constant 0 : i32
    %c0_i32_1 = arith.constant 0 : i32
    return %c0_i32, %c0_i32_0 : i32, i32
  }
  func.func @transform_3(%arg0: i32, %arg1: i32) -> (i32, i32) {
    %c0_i32 = arith.constant 0 : i32
    %c0_i32_0 = arith.constant 0 : i32
    %c0_i32_1 = arith.constant 0 : i32
    return %c0_i32, %c0_i32_0 : i32, i32
  }
  func.func @transform_4(%arg0: i32, %arg1: i32) -> (i32, i32, i32) {
    %c0_i32 = arith.constant 0 : i32
    %c0_i32_0 = arith.constant 0 : i32
    %c0_i32_1 = arith.constant 0 : i32
    %c0_i32_2 = arith.constant 0 : i32
    return %c0_i32, %c0_i32_0, %c0_i32_1 : i32, i32, i32
  }
  func.func @transform_5(%arg0: i32, %arg1: i32) -> (i32, i32) {
    %c0_i32 = arith.constant 0 : i32
    %c0_i32_0 = arith.constant 0 : i32
    %c0_i32_1 = arith.constant 0 : i32
    return %c0_i32, %c0_i32_0 : i32, i32
  }
  func.func @transform_6(%arg0: i32, %arg1: i32) -> (i32, i32) {
    %c0_i32 = arith.constant 0 : i32
    %c0_i32_0 = arith.constant 0 : i32
    %c0_i32_1 = arith.constant 0 : i32
    return %c0_i32, %c0_i32_0 : i32, i32
  }
  func.func @transform_7(%arg0: i32, %arg1: i32) -> (i32, i32) {
    %c0_i32 = arith.constant 0 : i32
    %c0_i32_0 = arith.constant 0 : i32
    %c0_i32_1 = arith.constant 0 : i32
    return %c0_i32, %c0_i32_0 : i32, i32
  }
  func.func @transform_8(%arg0: i32, %arg1: i32) -> (i32, i32) {
    %c0_i32 = arith.constant 0 : i32
    %c0_i32_0 = arith.constant 0 : i32
    %c0_i32_1 = arith.constant 0 : i32
    return %c0_i32, %c0_i32_0 : i32, i32
  }
  func.func @transform_9(%arg0: i32, %arg1: i32) -> (i32, i32) {
    %c0_i32 = arith.constant 0 : i32
    %c0_i32_0 = arith.constant 0 : i32
    %c0_i32_1 = arith.constant 0 : i32
    return %c0_i32, %c0_i32_0 : i32, i32
  }
  func.func @transform_10(%arg0: i32, %arg1: i32) -> (i32, i32, i32, i32) {
    %c0_i32 = arith.constant 0 : i32
    %c0_i32_0 = arith.constant 0 : i32
    %c0_i32_1 = arith.constant 0 : i32
    return %arg0, %arg1, %c0_i32, %c0_i32_0 : i32, i32, i32, i32
  }
}

</mosaic_0001>

<llo_original>
// kernel: bottleneck_layer.3
$region0: #{bottleneck_layer.3}
  #allocation0 [shape = 'u32[]', space=smem, size = 0x4, offset = 0x4, fixed_abs, tag = 'smem constant byte address 0x4 - core index']
  #allocation1 [shape = 'u32[72,128]{1,0:T(1,128)}', space=vmem, size = 0x9000, scoped, tag = 'internal scratch']
  #allocation2 [shape = 'f32[10,10,64]{2,1,0:T(8,128)}', space=vmem, size = 0x14000, scoped, tag = 'scratch operand']
  %s0 = inlined_call_operand.vmem [shape: bf16[2,10,8,16], index: 0, kind: input, shape index: {}]
  %s1 = inlined_call_operand.vmem [shape: bf16[16,64], index: 1, kind: input, shape index: {}]
  %s2 = inlined_call_operand.vmem [shape: f32[1,64], index: 2, kind: input, shape index: {}]
  %s3 = inlined_call_operand.vmem [shape: f32[1,64], index: 3, kind: input, shape index: {}]
  %s4 = inlined_call_operand.vmem [shape: bf16[3,3,64], index: 4, kind: input, shape index: {}]
  %s5 = inlined_call_operand.vmem [shape: f32[1,64], index: 5, kind: input, shape index: {}]
  %s6 = inlined_call_operand.vmem [shape: f32[1,64], index: 6, kind: input, shape index: {}]
  %s7 = inlined_call_operand.vmem [shape: bf16[64,16], index: 7, kind: input, shape index: {}]
  %s8 = inlined_call_operand.vmem [shape: f32[1,16], index: 8, kind: input, shape index: {}]
  %s9 = inlined_call_operand.vmem [shape: f32[1,16], index: 9, kind: input, shape index: {}]
  %s10 = inlined_call_operand.vmem [shape: bf16[2,8,8,16], index: 10, kind: output, shape index: {}]
  %s11 = sld [smem:[#allocation0]]
  $region77: #{bottleneck_layer.3} parent=0
    _
  %s13 = ssub.s32 1, %s11
  %s14 = scalar_select 0, %s13, %s11
  loop: start=0, step=1, limit=4
  $region2: #{bottleneck_layer.3} parent=0 // loop_pre_header
    _
  $region3: #{bottleneck_layer.3} parent=0 // loop_header
    %s16 = sphi 0, %s20
    %p17 = scmp.ge.s32.totalorder %s16, 4
    %s23 = sphi 0, %s35
    %s24 = sphi 0, %s31
    %s25 = sphi 0, %s23
    %s26 = sphi 0, %s24
    %s27 = sphi 0, %s25
    %s28 = sphi 0, %s26
    %s38 = sphi 0, %s40
    %s41 = sphi 0, %s38
    %s42 = sphi 0, %s41
    %s58 = sphi 0, %s42
    %s62 = sphi 0, %s62
    %s64 = sphi 0, %s62
    %s65 = sphi 0, %s64
    %s79 = sphi 0, %s65
    %s83 = sphi 0, %s83
    %s85 = sphi 0, %s83
    %s86 = sphi 0, %s85
    %s100 = sphi 0, %s86
    %s104 = sphi 0, %s104
    %s106 = sphi 0, %s104
    %s107 = sphi 0, %s106
    %s121 = sphi 0, %s107
    %s125 = sphi 0, %s125
    %s127 = sphi 0, %s125
    %s128 = sphi 0, %s127
    %s142 = sphi 0, %s128
    %s146 = sphi 0, %s146
    %s148 = sphi 0, %s146
    %s149 = sphi 0, %s148
    %s163 = sphi 0, %s149
    %s167 = sphi 0, %s167
    %s169 = sphi 0, %s167
    %s170 = sphi 0, %s169
    %s184 = sphi 0, %s170
    %s188 = sphi 0, %s188
    %s190 = sphi 0, %s188
    %s191 = sphi 0, %s190
    %s205 = sphi 0, %s191
    %s209 = sphi 0, %s209
    %s211 = sphi 0, %s209
    %s212 = sphi 0, %s211
    %s226 = sphi 0, %s212
    %s230 = sphi 0, %s230
    %s232 = sphi 0, %s230
    %s233 = sphi 0, %s232
    %s247 = sphi 0, %s233
    %s255 = sphi 0, %s257
    %s258 = sphi 0, %s255
    %s259 = sphi 0, %s258
    %s275 = sphi 0, %s259
  $region4: #{bottleneck_layer.3} parent=0 // loop_header_branch
    %19 = sbr.rel (%p17) target = $region8
  $region5: #{bottleneck_layer.3} parent=0 // loop_body
    %s21 = ssub.s32 %s16, 1
    %s22 = ssub.s32 %s16, 2
    %s29 = sadd.s32 1, %s24
    %p30 = scmp.ge.s32.totalorder %s29, 1
    %s31 = scalar_select %p30, 0, %s29
    %s32 = sadd.s32 1, %s23
    %s33 = scalar_select %p30, %s32, %s23
    %p34 = scmp.ge.s32.totalorder %s33, 2
    %s35 = scalar_select %p34, 0, %s33
    %s36 = ssub.s32 %s23, %s35
    %p37 = scmp.eq.s32.totalorder %s36, 0
    %s39 = sadd.s32 %s38, 1
    %s40 = scalar_select %p37, %s38, %s39
    %p43 = pneg %p37
    %p44 = scmp.eq.s32.totalorder %s16, 1
    %p45 = por %p43, %p44
    %p46 = scmp.ne.s32.totalorder %s38, %s41
    %p47 = scmp.eq.s32.totalorder %s16, 0
    %p48 = por %p46, %p47
    %p49 = scmp.ne.s32.totalorder %s38, %s41
    %p50 = scmp.eq.s32.totalorder %s21, 1
    %p51 = por %p49, %p50
    %p52 = scmp.ne.s32.totalorder %s41, %s42
    %p53 = scmp.eq.s32.totalorder %s21, 0
    %p54 = por %p52, %p53
    %p55 = scmp.ne.s32.totalorder %s41, %s42
    %p56 = scmp.eq.s32.totalorder %s22, 1
    %p57 = por %p55, %p56
    %p59 = scmp.ne.s32.totalorder %s42, %s58
    %p60 = scmp.eq.s32.totalorder %s22, 0
    %p61 = por %p59, %p60
    %s63 = sadd.s32 %s62, 1
    %p66 = scmp.eq.s32.totalorder %s16, 1
    %p67 = scmp.ne.s32.totalorder %s62, %s64
    %p68 = scmp.eq.s32.totalorder %s16, 0
    %p69 = por %p67, %p68
    %p70 = scmp.ne.s32.totalorder %s62, %s64
    %p71 = scmp.eq.s32.totalorder %s21, 1
    %p72 = por %p70, %p71
    %p73 = scmp.ne.s32.totalorder %s64, %s65
    %p74 = scmp.eq.s32.totalorder %s21, 0
    %p75 = por %p73, %p74
    %p76 = scmp.ne.s32.totalorder %s64, %s65
    %p77 = scmp.eq.s32.totalorder %s22, 1
    %p78 = por %p76, %p77
    %p80 = scmp.ne.s32.totalorder %s65, %s79
    %p81 = scmp.eq.s32.totalorder %s22, 0
    %p82 = por %p80, %p81
    %s84 = sadd.s32 %s83, 1
    %p87 = scmp.eq.s32.totalorder %s16, 1
    %p88 = scmp.ne.s32.totalorder %s83, %s85
    %p89 = scmp.eq.s32.totalorder %s16, 0
    %p90 = por %p88, %p89
    %p91 = scmp.ne.s32.totalorder %s83, %s85
    %p92 = scmp.eq.s32.totalorder %s21, 1
    %p93 = por %p91, %p92
    %p94 = scmp.ne.s32.totalorder %s85, %s86
    %p95 = scmp.eq.s32.totalorder %s21, 0
    %p96 = por %p94, %p95
    %p97 = scmp.ne.s32.totalorder %s85, %s86
    %p98 = scmp.eq.s32.totalorder %s22, 1
    %p99 = por %p97, %p98
    %p101 = scmp.ne.s32.totalorder %s86, %s100
    %p102 = scmp.eq.s32.totalorder %s22, 0
    %p103 = por %p101, %p102
    %s105 = sadd.s32 %s104, 1
    %p108 = scmp.eq.s32.totalorder %s16, 1
    %p109 = scmp.ne.s32.totalorder %s104, %s106
    %p110 = scmp.eq.s32.totalorder %s16, 0
    %p111 = por %p109, %p110
    %p112 = scmp.ne.s32.totalorder %s104, %s106
    %p113 = scmp.eq.s32.totalorder %s21, 1
    %p114 = por %p112, %p113
    %p115 = scmp.ne.s32.totalorder %s106, %s107
    %p116 = scmp.eq.s32.totalorder %s21, 0
    %p117 = por %p115, %p116
    %p118 = scmp.ne.s32.totalorder %s106, %s107
    %p119 = scmp.eq.s32.totalorder %s22, 1
    %p120 = por %p118, %p119
    %p122 = scmp.ne.s32.totalorder %s107, %s121
    %p123 = scmp.eq.s32.totalorder %s22, 0
    %p124 = por %p122, %p123
    %s126 = sadd.s32 %s125, 1
    %p129 = scmp.eq.s32.totalorder %s16, 1
    %p130 = scmp.ne.s32.totalorder %s125, %s127
    %p131 = scmp.eq.s32.totalorder %s16, 0
    %p132 = por %p130, %p131
    %p133 = scmp.ne.s32.totalorder %s125, %s127
    %p134 = scmp.eq.s32.totalorder %s21, 1
    %p135 = por %p133, %p134
    %p136 = scmp.ne.s32.totalorder %s127, %s128
    %p137 = scmp.eq.s32.totalorder %s21, 0
    %p138 = por %p136, %p137
    %p139 = scmp.ne.s32.totalorder %s127, %s128
    %p140 = scmp.eq.s32.totalorder %s22, 1
    %p141 = por %p139, %p140
    %p143 = scmp.ne.s32.totalorder %s128, %s142
    %p144 = scmp.eq.s32.totalorder %s22, 0
    %p145 = por %p143, %p144
    %s147 = sadd.s32 %s146, 1
    %p150 = scmp.eq.s32.totalorder %s16, 1
    %p151 = scmp.ne.s32.totalorder %s146, %s148
    %p152 = scmp.eq.s32.totalorder %s16, 0
    %p153 = por %p151, %p152
    %p154 = scmp.ne.s32.totalorder %s146, %s148
    %p155 = scmp.eq.s32.totalorder %s21, 1
    %p156 = por %p154, %p155
    %p157 = scmp.ne.s32.totalorder %s148, %s149
    %p158 = scmp.eq.s32.totalorder %s21, 0
    %p159 = por %p157, %p158
    %p160 = scmp.ne.s32.totalorder %s148, %s149
    %p161 = scmp.eq.s32.totalorder %s22, 1
    %p162 = por %p160, %p161
    %p164 = scmp.ne.s32.totalorder %s149, %s163
    %p165 = scmp.eq.s32.totalorder %s22, 0
    %p166 = por %p164, %p165
    %s168 = sadd.s32 %s167, 1
    %p171 = scmp.eq.s32.totalorder %s16, 1
    %p172 = scmp.ne.s32.totalorder %s167, %s169
    %p173 = scmp.eq.s32.totalorder %s16, 0
    %p174 = por %p172, %p173
    %p175 = scmp.ne.s32.totalorder %s167, %s169
    %p176 = scmp.eq.s32.totalorder %s21, 1
    %p177 = por %p175, %p176
    %p178 = scmp.ne.s32.totalorder %s169, %s170
    %p179 = scmp.eq.s32.totalorder %s21, 0
    %p180 = por %p178, %p179
    %p181 = scmp.ne.s32.totalorder %s169, %s170
    %p182 = scmp.eq.s32.totalorder %s22, 1
    %p183 = por %p181, %p182
    %p185 = scmp.ne.s32.totalorder %s170, %s184
    %p186 = scmp.eq.s32.totalorder %s22, 0
    %p187 = por %p185, %p186
    %s189 = sadd.s32 %s188, 1
    %p192 = scmp.eq.s32.totalorder %s16, 1
    %p193 = scmp.ne.s32.totalorder %s188, %s190
    %p194 = scmp.eq.s32.totalorder %s16, 0
    %p195 = por %p193, %p194
    %p196 = scmp.ne.s32.totalorder %s188, %s190
    %p197 = scmp.eq.s32.totalorder %s21, 1
    %p198 = por %p196, %p197
    %p199 = scmp.ne.s32.totalorder %s190, %s191
    %p200 = scmp.eq.s32.totalorder %s21, 0
    %p201 = por %p199, %p200
    %p202 = scmp.ne.s32.totalorder %s190, %s191
    %p203 = scmp.eq.s32.totalorder %s22, 1
    %p204 = por %p202, %p203
    %p206 = scmp.ne.s32.totalorder %s191, %s205
    %p207 = scmp.eq.s32.totalorder %s22, 0
    %p208 = por %p206, %p207
    %s210 = sadd.s32 %s209, 1
    %p213 = scmp.eq.s32.totalorder %s16, 1
    %p214 = scmp.ne.s32.totalorder %s209, %s211
    %p215 = scmp.eq.s32.totalorder %s16, 0
    %p216 = por %p214, %p215
    %p217 = scmp.ne.s32.totalorder %s209, %s211
    %p218 = scmp.eq.s32.totalorder %s21, 1
    %p219 = por %p217, %p218
    %p220 = scmp.ne.s32.totalorder %s211, %s212
    %p221 = scmp.eq.s32.totalorder %s21, 0
    %p222 = por %p220, %p221
    %p223 = scmp.ne.s32.totalorder %s211, %s212
    %p224 = scmp.eq.s32.totalorder %s22, 1
    %p225 = por %p223, %p224
    %p227 = scmp.ne.s32.totalorder %s212, %s226
    %p228 = scmp.eq.s32.totalorder %s22, 0
    %p229 = por %p227, %p228
    %s231 = sadd.s32 %s230, 1
    %p234 = scmp.eq.s32.totalorder %s16, 1
    %p235 = scmp.ne.s32.totalorder %s230, %s232
    %p236 = scmp.eq.s32.totalorder %s16, 0
    %p237 = por %p235, %p236
    %p238 = scmp.ne.s32.totalorder %s230, %s232
    %p239 = scmp.eq.s32.totalorder %s21, 1
    %p240 = por %p238, %p239
    %p241 = scmp.ne.s32.totalorder %s232, %s233
    %p242 = scmp.eq.s32.totalorder %s21, 0
    %p243 = por %p241, %p242
    %p244 = scmp.ne.s32.totalorder %s232, %s233
    %p245 = scmp.eq.s32.totalorder %s22, 1
    %p246 = por %p244, %p245
    %p248 = scmp.ne.s32.totalorder %s233, %s247
    %p249 = scmp.eq.s32.totalorder %s22, 0
    %p250 = por %p248, %p249
    %s251 = ssub.s32 %s23, %s35
    %s252 = ssub.s32 %s24, %s31
    %s253 = sor.u32 %s251, %s252
    %p254 = scmp.eq.s32.totalorder %s253, 0
    %s256 = sadd.s32 %s255, 1
    %s257 = scalar_select %p254, %s255, %s256
    %p260 = pneg %p254
    %p261 = scmp.eq.s32.totalorder %s16, 1
    %p262 = por %p260, %p261
    %p263 = scmp.ne.s32.totalorder %s255, %s258
    %p264 = scmp.eq.s32.totalorder %s16, 0
    %p265 = por %p263, %p264
    %p266 = scmp.ne.s32.totalorder %s255, %s258
    %p267 = scmp.eq.s32.totalorder %s21, 1
    %p268 = por %p266, %p267
    %p269 = scmp.ne.s32.totalorder %s258, %s259
    %p270 = scmp.eq.s32.totalorder %s21, 0
    %p271 = por %p269, %p270
    %p272 = scmp.ne.s32.totalorder %s258, %s259
    %p273 = scmp.eq.s32.totalorder %s22, 1
    %p274 = por %p272, %p273
    %p276 = scmp.ne.s32.totalorder %s259, %s275
    %p277 = scmp.eq.s32.totalorder %s22, 0
    %p278 = por %p276, %p277
    %p279 = scmp.le.s32.totalorder 1, %s16
    %p280 = scmp.lt.s32.totalorder %s16, 3
    %p281 = pnand %p279, %p280
    %p282 = pneg %p281
    // Predicated region
    $region9: #{bottleneck_layer.3} parent=5 // pred_check
      _
    $region10: #{bottleneck_layer.3} parent=5 // pred_check_branch
      %284 = sbr.rel (%p281) target = $region12
    $region11: #{bottleneck_layer.3} parent=5 // pred_region
      %s285 = ssub.s32 %s16, 1
      // Predicated region
      $region13: #{bottleneck_layer.3} parent=11 // pred_check
        %p286 = pneg %p75
      $region14: #{bottleneck_layer.3} parent=11 // pred_check_branch
        %288 = sbr.rel (%p286) target = $region16
      $region15: #{bottleneck_layer.3} parent=11 // pred_region
        _
      $region16: #{bottleneck_layer.3} parent=11 // pred_fallthru
        _
      // Predicated region
      $region17: #{bottleneck_layer.3} parent=11 // pred_check
        %p289 = pneg %p96
      $region18: #{bottleneck_layer.3} parent=11 // pred_check_branch
        %291 = sbr.rel (%p289) target = $region20
      $region19: #{bottleneck_layer.3} parent=11 // pred_region
        _
      $region20: #{bottleneck_layer.3} parent=11 // pred_fallthru
        _
      // Predicated region
      $region21: #{bottleneck_layer.3} parent=11 // pred_check
        %p292 = pneg %p117
      $region22: #{bottleneck_layer.3} parent=11 // pred_check_branch
        %294 = sbr.rel (%p292) target = $region24
      $region23: #{bottleneck_layer.3} parent=11 // pred_region
        _
      $region24: #{bottleneck_layer.3} parent=11 // pred_fallthru
        _
      // Predicated region
      $region25: #{bottleneck_layer.3} parent=11 // pred_check
        %p295 = pneg %p138
      $region26: #{bottleneck_layer.3} parent=11 // pred_check_branch
        %297 = sbr.rel (%p295) target = $region28
      $region27: #{bottleneck_layer.3} parent=11 // pred_region
        _
      $region28: #{bottleneck_layer.3} parent=11 // pred_fallthru
        _
      // Predicated region
      $region29: #{bottleneck_layer.3} parent=11 // pred_check
        %p298 = pneg %p159
      $region30: #{bottleneck_layer.3} parent=11 // pred_check_branch
        %300 = sbr.rel (%p298) target = $region32
      $region31: #{bottleneck_layer.3} parent=11 // pred_region
        _
      $region32: #{bottleneck_layer.3} parent=11 // pred_fallthru
        _
      // Predicated region
      $region33: #{bottleneck_layer.3} parent=11 // pred_check
        %p301 = pneg %p180
      $region34: #{bottleneck_layer.3} parent=11 // pred_check_branch
        %303 = sbr.rel (%p301) target = $region36
      $region35: #{bottleneck_layer.3} parent=11 // pred_region
        _
      $region36: #{bottleneck_layer.3} parent=11 // pred_fallthru
        _
      // Predicated region
      $region37: #{bottleneck_layer.3} parent=11 // pred_check
        %p304 = pneg %p201
      $region38: #{bottleneck_layer.3} parent=11 // pred_check_branch
        %306 = sbr.rel (%p304) target = $region40
      $region39: #{bottleneck_layer.3} parent=11 // pred_region
        _
      $region40: #{bottleneck_layer.3} parent=11 // pred_fallthru
        _
      // Predicated region
      $region41: #{bottleneck_layer.3} parent=11 // pred_check
        %p307 = pneg %p222
      $region42: #{bottleneck_layer.3} parent=11 // pred_check_branch
        %309 = sbr.rel (%p307) target = $region44
      $region43: #{bottleneck_layer.3} parent=11 // pred_region
        _
      $region44: #{bottleneck_layer.3} parent=11 // pred_fallthru
        _
      // Predicated region
      $region45: #{bottleneck_layer.3} parent=11 // pred_check
        %p310 = pneg %p243
      $region46: #{bottleneck_layer.3} parent=11 // pred_check_branch
        %312 = sbr.rel (%p310) target = $region48
      $region47: #{bottleneck_layer.3} parent=11 // pred_region
        _
      $region48: #{bottleneck_layer.3} parent=11 // pred_fallthru
        _
    $region12: #{bottleneck_layer.3} parent=5 // pred_fallthru
      _
    %p313 = scmp.lt.s32.totalorder %s16, 2
    // Predicated region
    $region49: #{bottleneck_layer.3} parent=5 // pred_check
      %p314 = pneg %p313
    $region50: #{bottleneck_layer.3} parent=5 // pred_check_branch
      %316 = sbr.rel (%p314) target = $region52
    $region51: #{bottleneck_layer.3} parent=5 // pred_region
      // Predicated region
      $region53: #{bottleneck_layer.3} parent=51 // pred_check
        %p317 = pneg %p48
      $region54: #{bottleneck_layer.3} parent=51 // pred_check_branch
        %319 = sbr.rel (%p317) target = $region56
      $region55: #{bottleneck_layer.3} parent=51 // pred_region
        %p320 = scmp.lt.s32.totalorder %s23, 1
        %s321 = scalar_select %p320, %s23, 1
        %s322 = smul.addr %s321, 10
        %s323 = smul.addr %s322, 4
        %s324 = scalar_lea.vmem %s0, %s323
      $region56: #{bottleneck_layer.3} parent=51 // pred_fallthru
        _
    $region52: #{bottleneck_layer.3} parent=5 // pred_fallthru
      _
    %p325 = scmp.le.s32.totalorder 1, %s16
    %p326 = scmp.lt.s32.totalorder %s16, 3
    %p327 = pnand %p325, %p326
    %p328 = pneg %p327
    // Predicated region
    $region57: #{bottleneck_layer.3} parent=5 // pred_check
      _
    $region58: #{bottleneck_layer.3} parent=5 // pred_check_branch
      %330 = sbr.rel (%p327) target = $region60
    $region59: #{bottleneck_layer.3} parent=5 // pred_region
      %s331 = ssub.s32 %s16, 1
      %p332 = scmp.lt.s32.totalorder %s25, 1
      %s333 = scalar_select %p332, %s25, 1
      %s334 = smul.addr %s333, 10
      %s335 = smul.addr %s334, 4
      %s336 = scalar_lea.vmem %s0, %s335
      %p337 = pneg %p54
      %p338 = pneg %p51
      %p339 = pneg %p75
      %p340 = pneg %p72
      %p341 = pneg %p96
      %p342 = pneg %p93
      %p343 = pneg %p117
      %p344 = pneg %p114
      %p345 = pneg %p138
      %p346 = pneg %p135
      %p347 = pneg %p159
      %p348 = pneg %p156
      %p349 = pneg %p180
      %p350 = pneg %p177
      %p351 = pneg %p201
      %p352 = pneg %p198
      %p353 = pneg %p222
      %p354 = pneg %p219
      %p355 = pneg %p243
      %p356 = pneg %p240
      %p357 = pneg %p271
      %p358 = pneg %p268
      %s359 = smul.u32 8, %s26
      %p360 = scmp.lt.s32.totalorder %s25, 1
      %s361 = scalar_select %p360, %s25, 1
      %p362 = scmp.lt.s32.totalorder %s359, 7
      %s363 = scalar_select %p362, %s359, 7
      %s364 = smul.addr %s361, 8
      %s365 = sadd.s32 %s363, %s364
      %s366 = smul.addr %s365, 4
      %s367 = scalar_lea.vmem %s10, %s366
      %p368 = scmp.lt.s32.totalorder %s25, 1
      %s369 = scalar_select %p368, %s25, 1
      %s370 = smul.addr %s369, 10
      %s371 = smul.addr %s370, 4
      %s372 = scalar_lea.vmem %s0, %s371
      %s373 = smul.u32 8, %s26
      %p374 = scmp.lt.s32.totalorder %s25, 1
      %s375 = scalar_select %p374, %s25, 1
      %p376 = scmp.lt.s32.totalorder %s373, 7
      %s377 = scalar_select %p376, %s373, 7
      %s378 = smul.addr %s375, 8
      %s379 = sadd.s32 %s377, %s378
      %s380 = smul.addr %s379, 4
      %s381 = scalar_lea.vmem %s10, %s380
      %s382 = smul.u32 8, %s26
      %vm384 = vcmask 523264
      %385 = vst.msk [vmem:[#allocation2] sm:$0xff] %vm384, 0.0
      %vm386 = vcmask 517120
      %387 = vst.msk [vmem:[#allocation2 + $0x8] sm:$0x3] %vm386, 0.0
      %388 = vst.msk [vmem:[#allocation2 + $0x10] sm:$0xff] %vm384, 0.0
      %389 = vst.msk [vmem:[#allocation2 + $0x18] sm:$0x3] %vm386, 0.0
      %390 = vst.msk [vmem:[#allocation2 + $0x20] sm:$0xff] %vm384, 0.0
      %391 = vst.msk [vmem:[#allocation2 + $0x28] sm:$0x3] %vm386, 0.0
      %392 = vst.msk [vmem:[#allocation2 + $0x30] sm:$0xff] %vm384, 0.0
      %393 = vst.msk [vmem:[#allocation2 + $0x38] sm:$0x3] %vm386, 0.0
      %394 = vst.msk [vmem:[#allocation2 + $0x40] sm:$0xff] %vm384, 0.0
      %395 = vst.msk [vmem:[#allocation2 + $0x48] sm:$0x3] %vm386, 0.0
      %396 = vst.msk [vmem:[#allocation2 + $0x50] sm:$0xff] %vm384, 0.0
      %397 = vst.msk [vmem:[#allocation2 + $0x58] sm:$0x3] %vm386, 0.0
      %398 = vst.msk [vmem:[#allocation2 + $0x60] sm:$0xff] %vm384, 0.0
      %399 = vst.msk [vmem:[#allocation2 + $0x68] sm:$0x3] %vm386, 0.0
      %400 = vst.msk [vmem:[#allocation2 + $0x70] sm:$0xff] %vm384, 0.0
      %401 = vst.msk [vmem:[#allocation2 + $0x78] sm:$0x3] %vm386, 0.0
      %402 = vst.msk [vmem:[#allocation2 + $0x80] sm:$0xff] %vm384, 0.0
      %403 = vst.msk [vmem:[#allocation2 + $0x88] sm:$0x3] %vm386, 0.0
      %404 = vst.msk [vmem:[#allocation2 + $0x90] sm:$0xff] %vm384, 0.0
      %405 = vst.msk [vmem:[#allocation2 + $0x98] sm:$0x3] %vm386, 0.0
      %s406 = smul.u32 %s26, 8
      %s407 = smul.addr %s406, 4
      %s408 = scalar_lea.vmem %s372, %s407
      %v409 = vld [vmem:[%s408] sm:$0xf]
      %v410 = vld [vmem:[%s408 + $0x4] sm:$0xf]
      %v411 = vld [vmem:[%s408 + $0x8] sm:$0xf]
      %v412 = vld [vmem:[%s408 + $0xc] sm:$0xf]
      %v413 = vld [vmem:[%s408 + $0x10] sm:$0xf]
      %v414 = vld [vmem:[%s408 + $0x14] sm:$0xf]
      %v415 = vld [vmem:[%s408 + $0x18] sm:$0xf]
      %v416 = vld [vmem:[%s408 + $0x1c] sm:$0xf]
      %v417 = vld [vmem:[%s408 + $0x20] sm:$0xf]
      %v418 = vld [vmem:[%s408 + $0x24] sm:$0xf]
      %v419 = vld [vmem:[%s1] sm:$0xf]
      %v420 = vld [vmem:[%s1 + $0x4] sm:$0xf]
      %v431 = vunpack.c.l.b16 %v409
      %v432 = vunpack.c.l.b16 %v410
      %v433 = vunpack.c.l.b16 %v411
      %v434 = vunpack.c.l.b16 %v412
      %v435 = vunpack.c.l.b16 %v413
      %v436 = vunpack.c.l.b16 %v414
      %v437 = vunpack.c.l.b16 %v415
      %v438 = vunpack.c.l.b16 %v416
      %v439 = vunpack.c.l.b16 %v417
      %v440 = vunpack.c.l.b16 %v418
      %v441 = vpack.c.b16 %v432, %v431
      %v442 = vpack.c.b16 %v434, %v433
      %v443 = vpack.c.b16 %v436, %v435
      %v444 = vpack.c.b16 %v438, %v437
      %v445 = vpack.c.b16 %v440, %v439
      %v448 = vunpack.c.l.b16 %v419
      %v449 = vunpack.c.l.b16 %v420
      %v450 = vpack.c.b16 %v449, %v448
      %vm452 = vcmask 130048
      %v454 = vsel %vm452, %v441, 0
      %v457 = vsel %vm452, %v442, 0
      %v460 = vsel %vm452, %v443, 0
      %v463 = vsel %vm452, %v444, 0
      %v466 = vsel %vm452, %v445, 0
      %468 = vmatpush.bf16.msra.mxu0 0
      %469 = vmatpush.bf16.msra.mxu0 0
      %470 = vmatpush.bf16.msra.mxu0 0
      %471 = vmatpush.bf16.msra.mxu0 0
      %472 = vmatpush.bf16.msra.mxu0 0
      %473 = vmatpush.bf16.msra.mxu0 0
      %474 = vmatpush.bf16.msra.mxu0 0
      %475 = vmatpush.bf16.msra.mxu0 %v450
      %476 = vmatmul.bf16.gmra.mxu0 %v454
      %v477 = vpop.f32.mrf.mxu0
      %v478 = vadd.f32 0.0, %v477
      %v479 = vpop.f32.mrf.mxu0
      %v480 = vadd.f32 0.0, %v479
      %481 = vmatmul.bf16.gmra.mxu0 %v457
      %v482 = vpop.f32.mrf.mxu0
      %v483 = vadd.f32 0.0, %v482
      %v484 = vpop.f32.mrf.mxu0
      %v485 = vadd.f32 0.0, %v484
      %486 = vmatmul.bf16.gmra.mxu0 %v460
      %v487 = vpop.f32.mrf.mxu0
      %v488 = vadd.f32 0.0, %v487
      %v489 = vpop.f32.mrf.mxu0
      %v490 = vadd.f32 0.0, %v489
      %491 = vmatmul.bf16.gmra.mxu0 %v463
      %v492 = vpop.f32.mrf.mxu0
      %v493 = vadd.f32 0.0, %v492
      %v494 = vpop.f32.mrf.mxu0
      %v495 = vadd.f32 0.0, %v494
      %496 = vmatmul.bf16.gmra.mxu0 %v466
      %v497 = vpop.f32.mrf.mxu0
      %v498 = vadd.f32 0.0, %v497
      %v499 = vpop.f32.mrf.mxu0
      %v500 = vadd.f32 0.0, %v499
      %501 = vdwg.mxu0
      %v502 = vld [vmem:[%s2] sm:$0x1]
      %v504 = vperm.slane %v502, 0
      %v506 = vmul.f32 %v478, %v504
      %v507 = vmul.f32 %v480, %v504
      %v508 = vmul.f32 %v483, %v504
      %v509 = vmul.f32 %v485, %v504
      %v510 = vmul.f32 %v488, %v504
      %v511 = vmul.f32 %v490, %v504
      %v512 = vmul.f32 %v493, %v504
      %v513 = vmul.f32 %v495, %v504
      %v514 = vmul.f32 %v498, %v504
      %v515 = vmul.f32 %v500, %v504
      %v516 = vld [vmem:[%s3] sm:$0x1]
      %v518 = vperm.slane %v516, 0
      %v520 = vadd.f32 %v506, %v518
      %v521 = vadd.f32 %v507, %v518
      %v522 = vadd.f32 %v508, %v518
      %v523 = vadd.f32 %v509, %v518
      %v524 = vadd.f32 %v510, %v518
      %v525 = vadd.f32 %v511, %v518
      %v526 = vadd.f32 %v512, %v518
      %v527 = vadd.f32 %v513, %v518
      %v528 = vadd.f32 %v514, %v518
      %v529 = vadd.f32 %v515, %v518
      %v530 = vmax.f32 %v520, 0.0
      %v531 = vmax.f32 %v521, 0.0
      %v532 = vmax.f32 %v522, 0.0
      %v533 = vmax.f32 %v523, 0.0
      %v534 = vmax.f32 %v524, 0.0
      %v535 = vmax.f32 %v525, 0.0
      %v536 = vmax.f32 %v526, 0.0
      %v537 = vmax.f32 %v527, 0.0
      %v538 = vmax.f32 %v528, 0.0
      %v539 = vmax.f32 %v529, 0.0
      %v540 = vmin.f32 %v530, 6.0
      %v541 = vmin.f32 %v531, 6.0
      %v542 = vmin.f32 %v532, 6.0
      %v543 = vmin.f32 %v533, 6.0
      %v544 = vmin.f32 %v534, 6.0
      %v545 = vmin.f32 %v535, 6.0
      %v546 = vmin.f32 %v536, 6.0
      %v547 = vmin.f32 %v537, 6.0
      %v548 = vmin.f32 %v538, 6.0
      %v549 = vmin.f32 %v539, 6.0
      %550 = vst.msk [vmem:[#allocation2 + $0x1] sm:$0xff] %vm384, %v540
      %551 = vst.msk [vmem:[#allocation2 + $0x11] sm:$0xff] %vm384, %v541
      %552 = vst.msk [vmem:[#allocation2 + $0x21] sm:$0xff] %vm384, %v542
      %553 = vst.msk [vmem:[#allocation2 + $0x31] sm:$0xff] %vm384, %v543
      %554 = vst.msk [vmem:[#allocation2 + $0x41] sm:$0xff] %vm384, %v544
      %555 = vst.msk [vmem:[#allocation2 + $0x51] sm:$0xff] %vm384, %v545
      %556 = vst.msk [vmem:[#allocation2 + $0x61] sm:$0xff] %vm384, %v546
      %557 = vst.msk [vmem:[#allocation2 + $0x71] sm:$0xff] %vm384, %v547
      %558 = vst.msk [vmem:[#allocation2 + $0x81] sm:$0xff] %vm384, %v548
      %559 = vst.msk [vmem:[#allocation2 + $0x91] sm:$0xff] %vm384, %v549
      %p560 = scmp.eq.s32.totalorder %s26, 0
      // Predicated region
      $region61: #{bottleneck_layer.3} parent=59 // pred_check
        %p561 = pneg %p560
      $region62: #{bottleneck_layer.3} parent=59 // pred_check_branch
        %563 = sbr.rel (%p561) target = $region64
      $region63: #{bottleneck_layer.3} parent=59 // pred_region
        %564 = vst.msk [vmem:[#allocation2] sm:$0xff] %vm384, 0.0
        %565 = vst.msk [vmem:[#allocation2 + $0x8] sm:$0x3] %vm386, 0.0
        %s566 = scalar_lea.vmem [#allocation2], 144
        %567 = vst.msk [vmem:[%s566] sm:$0xff] %vm384, 0.0
        %568 = vst.msk [vmem:[%s566 + $0x8] sm:$0x3] %vm386, 0.0
      $region64: #{bottleneck_layer.3} parent=59 // pred_fallthru
        _
      %v569 = vld [vmem:[#allocation2] sm:$0xff]
      %v570 = vld [vmem:[#allocation2 + $0x10] sm:$0xff]
      %v571 = vld [vmem:[#allocation2 + $0x20] sm:$0xff]
      %v572 = vld [vmem:[#allocation2 + $0x30] sm:$0xff]
      %v573 = vld [vmem:[#allocation2 + $0x40] sm:$0xff]
      %v574 = vld [vmem:[#allocation2 + $0x50] sm:$0xff]
      %v575 = vld [vmem:[#allocation2 + $0x60] sm:$0xff]
      %v576 = vld [vmem:[#allocation2 + $0x70] sm:$0xff]
      %v577 = vld [vmem:[%s4] sm:$0x1]
      %v578 = vunpack.c.l.bf16 %v577
      %v579 = vperm.slane %v578, 0
      %v580 = vmul.f32 %v569, %v579
      %v581 = vmul.f32 %v570, %v579
      %v582 = vmul.f32 %v571, %v579
      %v583 = vmul.f32 %v572, %v579
      %v584 = vmul.f32 %v573, %v579
      %v585 = vmul.f32 %v574, %v579
      %v586 = vmul.f32 %v575, %v579
      %v587 = vmul.f32 %v576, %v579
      %v588 = vadd.f32 %v580, 0.0
      %v589 = vadd.f32 %v581, 0.0
      %v590 = vadd.f32 %v582, 0.0
      %v591 = vadd.f32 %v583, 0.0
      %v592 = vadd.f32 %v584, 0.0
      %v593 = vadd.f32 %v585, 0.0
      %v594 = vadd.f32 %v586, 0.0
      %v595 = vadd.f32 %v587, 0.0
      %v596 = vld [vmem:[#allocation2 + $0x1] sm:$0xff]
      %v597 = vld [vmem:[#allocation2 + $0x11] sm:$0xff]
      %v598 = vld [vmem:[#allocation2 + $0x21] sm:$0xff]
      %v599 = vld [vmem:[#allocation2 + $0x31] sm:$0xff]
      %v600 = vld [vmem:[#allocation2 + $0x41] sm:$0xff]
      %v601 = vld [vmem:[#allocation2 + $0x51] sm:$0xff]
      %v602 = vld [vmem:[#allocation2 + $0x61] sm:$0xff]
      %v603 = vld [vmem:[#allocation2 + $0x71] sm:$0xff]
      %v604 = vperm.slane %v578, 1
      %v605 = vmul.f32 %v596, %v604
      %v606 = vmul.f32 %v597, %v604
      %v607 = vmul.f32 %v598, %v604
      %v608 = vmul.f32 %v599, %v604
      %v609 = vmul.f32 %v600, %v604
      %v610 = vmul.f32 %v601, %v604
      %v611 = vmul.f32 %v602, %v604
      %v612 = vmul.f32 %v603, %v604
      %v613 = vadd.f32 %v588, %v605
      %v614 = vadd.f32 %v589, %v606
      %v615 = vadd.f32 %v590, %v607
      %v616 = vadd.f32 %v591, %v608
      %v617 = vadd.f32 %v592, %v609
      %v618 = vadd.f32 %v593, %v610
      %v619 = vadd.f32 %v594, %v611
      %v620 = vadd.f32 %v595, %v612
      %v621 = vld [vmem:[#allocation2 + $0x2] sm:$0xff]
      %v622 = vld [vmem:[#allocation2 + $0x12] sm:$0xff]
      %v623 = vld [vmem:[#allocation2 + $0x22] sm:$0xff]
      %v624 = vld [vmem:[#allocation2 + $0x32] sm:$0xff]
      %v625 = vld [vmem:[#allocation2 + $0x42] sm:$0xff]
      %v626 = vld [vmem:[#allocation2 + $0x52] sm:$0xff]
      %v627 = vld [vmem:[#allocation2 + $0x62] sm:$0xff]
      %v628 = vld [vmem:[#allocation2 + $0x72] sm:$0xff]
      %v629 = vld [vmem:[%s4] sm:$0x2]
      %v630 = vunpack.c.l.bf16 %v629
      %v631 = vperm.slane %v630, 2
      %v632 = vmul.f32 %v621, %v631
      %v633 = vmul.f32 %v622, %v631
      %v634 = vmul.f32 %v623, %v631
      %v635 = vmul.f32 %v624, %v631
      %v636 = vmul.f32 %v625, %v631
      %v637 = vmul.f32 %v626, %v631
      %v638 = vmul.f32 %v627, %v631
      %v639 = vmul.f32 %v628, %v631
      %v640 = vadd.f32 %v613, %v632
      %v641 = vadd.f32 %v614, %v633
      %v642 = vadd.f32 %v615, %v634
      %v643 = vadd.f32 %v616, %v635
      %v644 = vadd.f32 %v617, %v636
      %v645 = vadd.f32 %v618, %v637
      %v646 = vadd.f32 %v619, %v638
      %v647 = vadd.f32 %v620, %v639
      %s648 = scalar_lea.vmem [#allocation2], 16
      %v649 = vld [vmem:[%s648] sm:$0xff]
      %v650 = vld [vmem:[%s648 + $0x10] sm:$0xff]
      %v651 = vld [vmem:[%s648 + $0x20] sm:$0xff]
      %v652 = vld [vmem:[%s648 + $0x30] sm:$0xff]
      %v653 = vld [vmem:[%s648 + $0x40] sm:$0xff]
      %v654 = vld [vmem:[%s648 + $0x50] sm:$0xff]
      %v655 = vld [vmem:[%s648 + $0x60] sm:$0xff]
      %v656 = vld [vmem:[%s648 + $0x70] sm:$0xff]
      %s657 = scalar_lea.vmem %s4, 2
      %v658 = vld [vmem:[%s657] sm:$0x1]
      %v659 = vunpack.c.l.bf16 %v658
      %v660 = vperm.slane %v659, 0
      %v661 = vmul.f32 %v649, %v660
      %v662 = vmul.f32 %v650, %v660
      %v663 = vmul.f32 %v651, %v660
      %v664 = vmul.f32 %v652, %v660
      %v665 = vmul.f32 %v653, %v660
      %v666 = vmul.f32 %v654, %v660
      %v667 = vmul.f32 %v655, %v660
      %v668 = vmul.f32 %v656, %v660
      %v669 = vadd.f32 %v640, %v661
      %v670 = vadd.f32 %v641, %v662
      %v671 = vadd.f32 %v642, %v663
      %v672 = vadd.f32 %v643, %v664
      %v673 = vadd.f32 %v644, %v665
      %v674 = vadd.f32 %v645, %v666
      %v675 = vadd.f32 %v646, %v667
      %v676 = vadd.f32 %v647, %v668
      %v677 = vld [vmem:[%s648 + $0x1] sm:$0xff]
      %v678 = vld [vmem:[%s648 + $0x11] sm:$0xff]
      %v679 = vld [vmem:[%s648 + $0x21] sm:$0xff]
      %v680 = vld [vmem:[%s648 + $0x31] sm:$0xff]
      %v681 = vld [vmem:[%s648 + $0x41] sm:$0xff]
      %v682 = vld [vmem:[%s648 + $0x51] sm:$0xff]
      %v683 = vld [vmem:[%s648 + $0x61] sm:$0xff]
      %v684 = vld [vmem:[%s648 + $0x71] sm:$0xff]
      %v685 = vperm.slane %v659, 1
      %v686 = vmul.f32 %v677, %v685
      %v687 = vmul.f32 %v678, %v685
      %v688 = vmul.f32 %v679, %v685
      %v689 = vmul.f32 %v680, %v685
      %v690 = vmul.f32 %v681, %v685
      %v691 = vmul.f32 %v682, %v685
      %v692 = vmul.f32 %v683, %v685
      %v693 = vmul.f32 %v684, %v685
      %v694 = vadd.f32 %v669, %v686
      %v695 = vadd.f32 %v670, %v687
      %v696 = vadd.f32 %v671, %v688
      %v697 = vadd.f32 %v672, %v689
      %v698 = vadd.f32 %v673, %v690
      %v699 = vadd.f32 %v674, %v691
      %v700 = vadd.f32 %v675, %v692
      %v701 = vadd.f32 %v676, %v693
      %v702 = vld [vmem:[%s648 + $0x2] sm:$0xff]
      %v703 = vld [vmem:[%s648 + $0x12] sm:$0xff]
      %v704 = vld [vmem:[%s648 + $0x22] sm:$0xff]
      %v705 = vld [vmem:[%s648 + $0x32] sm:$0xff]
      %v706 = vld [vmem:[%s648 + $0x42] sm:$0xff]
      %v707 = vld [vmem:[%s648 + $0x52] sm:$0xff]
      %v708 = vld [vmem:[%s648 + $0x62] sm:$0xff]
      %v709 = vld [vmem:[%s648 + $0x72] sm:$0xff]
      %v710 = vld [vmem:[%s657] sm:$0x2]
      %v711 = vunpack.c.l.bf16 %v710
      %v712 = vperm.slane %v711, 2
      %v713 = vmul.f32 %v702, %v712
      %v714 = vmul.f32 %v703, %v712
      %v715 = vmul.f32 %v704, %v712
      %v716 = vmul.f32 %v705, %v712
      %v717 = vmul.f32 %v706, %v712
      %v718 = vmul.f32 %v707, %v712
      %v719 = vmul.f32 %v708, %v712
      %v720 = vmul.f32 %v709, %v712
      %v721 = vadd.f32 %v694, %v713
      %v722 = vadd.f32 %v695, %v714
      %v723 = vadd.f32 %v696, %v715
      %v724 = vadd.f32 %v697, %v716
      %v725 = vadd.f32 %v698, %v717
      %v726 = vadd.f32 %v699, %v718
      %v727 = vadd.f32 %v700, %v719
      %v728 = vadd.f32 %v701, %v720
      %s729 = scalar_lea.vmem [#allocation2], 32
      %v730 = vld [vmem:[%s729] sm:$0xff]
      %v731 = vld [vmem:[%s729 + $0x10] sm:$0xff]
      %v732 = vld [vmem:[%s729 + $0x20] sm:$0xff]
      %v733 = vld [vmem:[%s729 + $0x30] sm:$0xff]
      %v734 = vld [vmem:[%s729 + $0x40] sm:$0xff]
      %v735 = vld [vmem:[%s729 + $0x50] sm:$0xff]
      %v736 = vld [vmem:[%s729 + $0x60] sm:$0xff]
      %v737 = vld [vmem:[%s729 + $0x70] sm:$0xff]
      %s738 = scalar_lea.vmem %s4, 4
      %v739 = vld [vmem:[%s738] sm:$0x1]
      %v740 = vunpack.c.l.bf16 %v739
      %v741 = vperm.slane %v740, 0
      %v742 = vmul.f32 %v730, %v741
      %v743 = vmul.f32 %v731, %v741
      %v744 = vmul.f32 %v732, %v741
      %v745 = vmul.f32 %v733, %v741
      %v746 = vmul.f32 %v734, %v741
      %v747 = vmul.f32 %v735, %v741
      %v748 = vmul.f32 %v736, %v741
      %v749 = vmul.f32 %v737, %v741
      %v750 = vadd.f32 %v721, %v742
      %v751 = vadd.f32 %v722, %v743
      %v752 = vadd.f32 %v723, %v744
      %v753 = vadd.f32 %v724, %v745
      %v754 = vadd.f32 %v725, %v746
      %v755 = vadd.f32 %v726, %v747
      %v756 = vadd.f32 %v727, %v748
      %v757 = vadd.f32 %v728, %v749
      %v758 = vld [vmem:[%s729 + $0x1] sm:$0xff]
      %v759 = vld [vmem:[%s729 + $0x11] sm:$0xff]
      %v760 = vld [vmem:[%s729 + $0x21] sm:$0xff]
      %v761 = vld [vmem:[%s729 + $0x31] sm:$0xff]
      %v762 = vld [vmem:[%s729 + $0x41] sm:$0xff]
      %v763 = vld [vmem:[%s729 + $0x51] sm:$0xff]
      %v764 = vld [vmem:[%s729 + $0x61] sm:$0xff]
      %v765 = vld [vmem:[%s729 + $0x71] sm:$0xff]
      %v766 = vperm.slane %v740, 1
      %v767 = vmul.f32 %v758, %v766
      %v768 = vmul.f32 %v759, %v766
      %v769 = vmul.f32 %v760, %v766
      %v770 = vmul.f32 %v761, %v766
      %v771 = vmul.f32 %v762, %v766
      %v772 = vmul.f32 %v763, %v766
      %v773 = vmul.f32 %v764, %v766
      %v774 = vmul.f32 %v765, %v766
      %v775 = vadd.f32 %v750, %v767
      %v776 = vadd.f32 %v751, %v768
      %v777 = vadd.f32 %v752, %v769
      %v778 = vadd.f32 %v753, %v770
      %v779 = vadd.f32 %v754, %v771
      %v780 = vadd.f32 %v755, %v772
      %v781 = vadd.f32 %v756, %v773
      %v782 = vadd.f32 %v757, %v774
      %v783 = vld [vmem:[%s729 + $0x2] sm:$0xff]
      %v784 = vld [vmem:[%s729 + $0x12] sm:$0xff]
      %v785 = vld [vmem:[%s729 + $0x22] sm:$0xff]
      %v786 = vld [vmem:[%s729 + $0x32] sm:$0xff]
      %v787 = vld [vmem:[%s729 + $0x42] sm:$0xff]
      %v788 = vld [vmem:[%s729 + $0x52] sm:$0xff]
      %v789 = vld [vmem:[%s729 + $0x62] sm:$0xff]
      %v790 = vld [vmem:[%s729 + $0x72] sm:$0xff]
      %v791 = vld [vmem:[%s738] sm:$0x2]
      %v792 = vunpack.c.l.bf16 %v791
      %v793 = vperm.slane %v792, 2
      %v794 = vmul.f32 %v783, %v793
      %v795 = vmul.f32 %v784, %v793
      %v796 = vmul.f32 %v785, %v793
      %v797 = vmul.f32 %v786, %v793
      %v798 = vmul.f32 %v787, %v793
      %v799 = vmul.f32 %v788, %v793
      %v800 = vmul.f32 %v789, %v793
      %v801 = vmul.f32 %v790, %v793
      %v802 = vadd.f32 %v775, %v794
      %v803 = vadd.f32 %v776, %v795
      %v804 = vadd.f32 %v777, %v796
      %v805 = vadd.f32 %v778, %v797
      %v806 = vadd.f32 %v779, %v798
      %v807 = vadd.f32 %v780, %v799
      %v808 = vadd.f32 %v781, %v800
      %v809 = vadd.f32 %v782, %v801
      %v810 = vld [vmem:[%s5] sm:$0x1]
      %v812 = vperm.slane %v810, 0
      %v814 = vmul.f32 %v802, %v812
      %v815 = vmul.f32 %v803, %v812
      %v816 = vmul.f32 %v804, %v812
      %v817 = vmul.f32 %v805, %v812
      %v818 = vmul.f32 %v806, %v812
      %v819 = vmul.f32 %v807, %v812
      %v820 = vmul.f32 %v808, %v812
      %v821 = vmul.f32 %v809, %v812
      %v822 = vld [vmem:[%s6] sm:$0x1]
      %v824 = vperm.slane %v822, 0
      %v826 = vadd.f32 %v814, %v824
      %v827 = vadd.f32 %v815, %v824
      %v828 = vadd.f32 %v816, %v824
      %v829 = vadd.f32 %v817, %v824
      %v830 = vadd.f32 %v818, %v824
      %v831 = vadd.f32 %v819, %v824
      %v832 = vadd.f32 %v820, %v824
      %v833 = vadd.f32 %v821, %v824
      %v834 = vmax.f32 %v826, 0.0
      %v835 = vmax.f32 %v827, 0.0
      %v836 = vmax.f32 %v828, 0.0
      %v837 = vmax.f32 %v829, 0.0
      %v838 = vmax.f32 %v830, 0.0
      %v839 = vmax.f32 %v831, 0.0
      %v840 = vmax.f32 %v832, 0.0
      %v841 = vmax.f32 %v833, 0.0
      %v842 = vmin.f32 %v834, 6.0
      %v843 = vmin.f32 %v835, 6.0
      %v844 = vmin.f32 %v836, 6.0
      %v845 = vmin.f32 %v837, 6.0
      %v846 = vmin.f32 %v838, 6.0
      %v847 = vmin.f32 %v839, 6.0
      %v848 = vmin.f32 %v840, 6.0
      %v849 = vmin.f32 %v841, 6.0
      %v850 = vpack.c.bf16 %v843, %v842
      %v851 = vpack.c.bf16 %v845, %v844
      %v852 = vpack.c.bf16 %v847, %v846
      %v853 = vpack.c.bf16 %v849, %v848
      %v854 = vld [vmem:[%s7] sm:$0xf]
      %v855 = vld [vmem:[%s7 + $0x4] sm:$0xf]
      %v856 = vld [vmem:[%s7 + $0x8] sm:$0xf]
      %v857 = vld [vmem:[%s7 + $0xc] sm:$0xf]
      %v858 = vld [vmem:[%s7 + $0x10] sm:$0xf]
      %v859 = vld [vmem:[%s7 + $0x14] sm:$0xf]
      %v860 = vld [vmem:[%s7 + $0x18] sm:$0xf]
      %v861 = vld [vmem:[%s7 + $0x1c] sm:$0xf]
      %v870 = vunpack.c.l.b16 %v854
      %v871 = vunpack.c.l.b16 %v855
      %v872 = vunpack.c.l.b16 %v856
      %v873 = vunpack.c.l.b16 %v857
      %v874 = vunpack.c.l.b16 %v858
      %v875 = vunpack.c.l.b16 %v859
      %v876 = vunpack.c.l.b16 %v860
      %v877 = vunpack.c.l.b16 %v861
      %v878 = vpack.c.b16 %v871, %v870
      %v879 = vpack.c.b16 %v873, %v872
      %v880 = vpack.c.b16 %v875, %v874
      %v881 = vpack.c.b16 %v877, %v876
      %v887 = vsel %vm384, %v850, 0
      %v890 = vsel %vm384, %v851, 0
      %v893 = vsel %vm384, %v852, 0
      %v896 = vsel %vm384, %v853, 0
      %898 = vmatpush.bf16.msra.mxu0 0
      %899 = vmatpush.bf16.msra.mxu0 0
      %900 = vmatpush.bf16.msra.mxu0 0
      %901 = vmatpush.bf16.msra.mxu0 0
      %902 = vmatpush.bf16.msra.mxu0 %v881
      %903 = vmatpush.bf16.msra.mxu0 %v880
      %904 = vmatpush.bf16.msra.mxu0 %v879
      %905 = vmatpush.bf16.msra.mxu0 %v878
      %906 = vmatmul.bf16.gmra.mxu0 %v887
      %v907 = vpop.f32.mrf.mxu0
      %v908 = vadd.f32 0.0, %v907
      %v909 = vpop.f32.mrf.mxu0
      %v910 = vadd.f32 0.0, %v909
      %911 = vmatmul.bf16.gmra.mxu0 %v890
      %v912 = vpop.f32.mrf.mxu0
      %v913 = vadd.f32 0.0, %v912
      %v914 = vpop.f32.mrf.mxu0
      %v915 = vadd.f32 0.0, %v914
      %916 = vmatmul.bf16.gmra.mxu0 %v893
      %v917 = vpop.f32.mrf.mxu0
      %v918 = vadd.f32 0.0, %v917
      %v919 = vpop.f32.mrf.mxu0
      %v920 = vadd.f32 0.0, %v919
      %921 = vmatmul.bf16.gmra.mxu0 %v896
      %v922 = vpop.f32.mrf.mxu0
      %v923 = vadd.f32 0.0, %v922
      %v924 = vpop.f32.mrf.mxu0
      %v925 = vadd.f32 0.0, %v924
      %926 = vdwg.mxu0
      %v927 = vld [vmem:[%s8] sm:$0x1]
      %v929 = vperm.slane %v927, 0
      %v931 = vmul.f32 %v908, %v929
      %v932 = vmul.f32 %v910, %v929
      %v933 = vmul.f32 %v913, %v929
      %v934 = vmul.f32 %v915, %v929
      %v935 = vmul.f32 %v918, %v929
      %v936 = vmul.f32 %v920, %v929
      %v937 = vmul.f32 %v923, %v929
      %v938 = vmul.f32 %v925, %v929
      %v939 = vld [vmem:[%s9] sm:$0x1]
      %v941 = vperm.slane %v939, 0
      %v943 = vadd.f32 %v931, %v941
      %v944 = vadd.f32 %v932, %v941
      %v945 = vadd.f32 %v933, %v941
      %v946 = vadd.f32 %v934, %v941
      %v947 = vadd.f32 %v935, %v941
      %v948 = vadd.f32 %v936, %v941
      %v949 = vadd.f32 %v937, %v941
      %v950 = vadd.f32 %v938, %v941
      %s951 = sadd.s32 %s406, 1
      %s952 = smul.addr %s951, 4
      %s953 = scalar_lea.vmem %s372, %s952
      %v954 = vld [vmem:[%s953] sm:$0xf]
      %v955 = vld [vmem:[%s953 + $0x4] sm:$0xf]
      %v956 = vld [vmem:[%s953 + $0x8] sm:$0xf]
      %v957 = vld [vmem:[%s953 + $0xc] sm:$0xf]
      %v958 = vld [vmem:[%s953 + $0x10] sm:$0xf]
      %v959 = vld [vmem:[%s953 + $0x14] sm:$0xf]
      %v960 = vld [vmem:[%s953 + $0x18] sm:$0xf]
      %v961 = vld [vmem:[%s953 + $0x1c] sm:$0xf]
      %v962 = vunpack.c.l.bf16 %v954
      %v963 = vunpack.c.l.bf16 %v955
      %v964 = vunpack.c.l.bf16 %v956
      %v965 = vunpack.c.l.bf16 %v957
      %v966 = vunpack.c.l.bf16 %v958
      %v967 = vunpack.c.l.bf16 %v959
      %v968 = vunpack.c.l.bf16 %v960
      %v969 = vunpack.c.l.bf16 %v961
      %v970 = vadd.f32 %v943, %v962
      %v971 = vadd.f32 %v944, %v963
      %v972 = vadd.f32 %v945, %v964
      %v973 = vadd.f32 %v946, %v965
      %v974 = vadd.f32 %v947, %v966
      %v975 = vadd.f32 %v948, %v967
      %v976 = vadd.f32 %v949, %v968
      %v977 = vadd.f32 %v950, %v969
      %v978 = vpack.c.bf16 %v970, %v970
      %v979 = vpack.c.bf16 %v971, %v971
      %v980 = vpack.c.bf16 %v972, %v972
      %v981 = vpack.c.bf16 %v973, %v973
      %v982 = vpack.c.bf16 %v974, %v974
      %v983 = vpack.c.bf16 %v975, %v975
      %v984 = vpack.c.bf16 %v976, %v976
      %v985 = vpack.c.bf16 %v977, %v977
      %vm986 = vcmask 125952
      %987 = vst.msk [vmem:[%s381] sm:$0xf] %vm986, %v978
      %988 = vst.msk [vmem:[%s381 + $0x4] sm:$0xf] %vm986, %v979
      %989 = vst.msk [vmem:[%s381 + $0x8] sm:$0xf] %vm986, %v980
      %990 = vst.msk [vmem:[%s381 + $0xc] sm:$0xf] %vm986, %v981
      %991 = vst.msk [vmem:[%s381 + $0x10] sm:$0xf] %vm986, %v982
      %992 = vst.msk [vmem:[%s381 + $0x14] sm:$0xf] %vm986, %v983
      %993 = vst.msk [vmem:[%s381 + $0x18] sm:$0xf] %vm986, %v984
      %994 = vst.msk [vmem:[%s381 + $0x1c] sm:$0xf] %vm986, %v985
      %s995 = smul.u32 8, %s26
      %p996 = scmp.lt.s32.totalorder %s25, 1
      %s997 = scalar_select %p996, %s25, 1
      %p998 = scmp.lt.s32.totalorder %s995, 7
      %s999 = scalar_select %p998, %s995, 7
      %s1000 = smul.addr %s997, 8
      %s1001 = sadd.s32 %s999, %s1000
      %s1002 = smul.addr %s1001, 4
      %s1003 = scalar_lea.vmem %s10, %s1002
      // Predicated region
      $region65: #{bottleneck_layer.3} parent=59 // pred_check
        %p1004 = pneg %p268
      $region66: #{bottleneck_layer.3} parent=59 // pred_check_branch
        %1006 = sbr.rel (%p1004) target = $region68
      $region67: #{bottleneck_layer.3} parent=59 // pred_region
        %s1007 = smul.u32 8, %s26
      $region68: #{bottleneck_layer.3} parent=59 // pred_fallthru
        _
    $region60: #{bottleneck_layer.3} parent=5 // pred_fallthru
      _
    %p1008 = scmp.le.s32.totalorder 2, %s16
    // Predicated region
    $region69: #{bottleneck_layer.3} parent=5 // pred_check
      %p1009 = pneg %p1008
    $region70: #{bottleneck_layer.3} parent=5 // pred_check_branch
      %1011 = sbr.rel (%p1009) target = $region72
    $region71: #{bottleneck_layer.3} parent=5 // pred_region
      %s1012 = ssub.s32 %s16, 2
      // Predicated region
      $region73: #{bottleneck_layer.3} parent=71 // pred_check
        %p1013 = pneg %p274
      $region74: #{bottleneck_layer.3} parent=71 // pred_check_branch
        %1015 = sbr.rel (%p1013) target = $region76
      $region75: #{bottleneck_layer.3} parent=71 // pred_region
        %s1016 = smul.u32 8, %s28
        %p1017 = scmp.lt.s32.totalorder %s27, 1
        %s1018 = scalar_select %p1017, %s27, 1
        %p1019 = scmp.lt.s32.totalorder %s1016, 7
        %s1020 = scalar_select %p1019, %s1016, 7
        %s1021 = smul.addr %s1018, 8
        %s1022 = sadd.s32 %s1020, %s1021
        %s1023 = smul.addr %s1022, 4
        %s1024 = scalar_lea.vmem %s10, %s1023
      $region76: #{bottleneck_layer.3} parent=71 // pred_fallthru
        _
    $region72: #{bottleneck_layer.3} parent=5 // pred_fallthru
      _
  $region6: #{bottleneck_layer.3} parent=0 // loop_footer
    %s20 = sadd.s32 1, %s16
  $region7: #{bottleneck_layer.3} parent=0 // loop_footer_branch
    %15 = sbr.rel target = $region3
  $region8: #{bottleneck_layer.3} parent=0 // loop_exit
    _

// kernel: bottleneck_layer.2
$region0: #{bottleneck_layer.2}
  #allocation0 [shape = 'u32[]', space=smem, size = 0x4, offset = 0x4, fixed_abs, tag = 'smem constant byte address 0x4 - core index']
  #allocation1 [shape = 'u32[72,128]{1,0:T(1,128)}', space=vmem, size = 0x9000, scoped, tag = 'internal scratch']
  #allocation2 [shape = 'f32[10,10,32]{2,1,0:T(8,128)}', space=vmem, size = 0x14000, scoped, tag = 'scratch operand']
  %s0 = inlined_call_operand.vmem [shape: bf16[2,10,8,8], index: 0, kind: input, shape index: {}]
  %s1 = inlined_call_operand.vmem [shape: bf16[8,32], index: 1, kind: input, shape index: {}]
  %s2 = inlined_call_operand.vmem [shape: f32[1,32], index: 2, kind: input, shape index: {}]
  %s3 = inlined_call_operand.vmem [shape: f32[1,32], index: 3, kind: input, shape index: {}]
  %s4 = inlined_call_operand.vmem [shape: bf16[3,3,32], index: 4, kind: input, shape index: {}]
  %s5 = inlined_call_operand.vmem [shape: f32[1,32], index: 5, kind: input, shape index: {}]
  %s6 = inlined_call_operand.vmem [shape: f32[1,32], index: 6, kind: input, shape index: {}]
  %s7 = inlined_call_operand.vmem [shape: bf16[32,16], index: 7, kind: input, shape index: {}]
  %s8 = inlined_call_operand.vmem [shape: f32[1,16], index: 8, kind: input, shape index: {}]
  %s9 = inlined_call_operand.vmem [shape: f32[1,16], index: 9, kind: input, shape index: {}]
  %s10 = inlined_call_operand.vmem [shape: bf16[2,8,8,16], index: 10, kind: output, shape index: {}]
  %s11 = sld [smem:[#allocation0]]
  $region77: #{bottleneck_layer.2} parent=0
    _
  %s13 = ssub.s32 1, %s11
  %s14 = scalar_select 0, %s13, %s11
  loop: start=0, step=1, limit=4
  $region2: #{bottleneck_layer.2} parent=0 // loop_pre_header
    _
  $region3: #{bottleneck_layer.2} parent=0 // loop_header
    %s16 = sphi 0, %s20
    %p17 = scmp.ge.s32.totalorder %s16, 4
    %s23 = sphi 0, %s35
    %s24 = sphi 0, %s31
    %s25 = sphi 0, %s23
    %s26 = sphi 0, %s24
    %s27 = sphi 0, %s25
    %s28 = sphi 0, %s26
    %s38 = sphi 0, %s40
    %s41 = sphi 0, %s38
    %s42 = sphi 0, %s41
    %s58 = sphi 0, %s42
    %s62 = sphi 0, %s62
    %s64 = sphi 0, %s62
    %s65 = sphi 0, %s64
    %s79 = sphi 0, %s65
    %s83 = sphi 0, %s83
    %s85 = sphi 0, %s83
    %s86 = sphi 0, %s85
    %s100 = sphi 0, %s86
    %s104 = sphi 0, %s104
    %s106 = sphi 0, %s104
    %s107 = sphi 0, %s106
    %s121 = sphi 0, %s107
    %s125 = sphi 0, %s125
    %s127 = sphi 0, %s125
    %s128 = sphi 0, %s127
    %s142 = sphi 0, %s128
    %s146 = sphi 0, %s146
    %s148 = sphi 0, %s146
    %s149 = sphi 0, %s148
    %s163 = sphi 0, %s149
    %s167 = sphi 0, %s167
    %s169 = sphi 0, %s167
    %s170 = sphi 0, %s169
    %s184 = sphi 0, %s170
    %s188 = sphi 0, %s188
    %s190 = sphi 0, %s188
    %s191 = sphi 0, %s190
    %s205 = sphi 0, %s191
    %s209 = sphi 0, %s209
    %s211 = sphi 0, %s209
    %s212 = sphi 0, %s211
    %s226 = sphi 0, %s212
    %s230 = sphi 0, %s230
    %s232 = sphi 0, %s230
    %s233 = sphi 0, %s232
    %s247 = sphi 0, %s233
    %s255 = sphi 0, %s257
    %s258 = sphi 0, %s255
    %s259 = sphi 0, %s258
    %s275 = sphi 0, %s259
  $region4: #{bottleneck_layer.2} parent=0 // loop_header_branch
    %19 = sbr.rel (%p17) target = $region8
  $region5: #{bottleneck_layer.2} parent=0 // loop_body
    %s21 = ssub.s32 %s16, 1
    %s22 = ssub.s32 %s16, 2
    %s29 = sadd.s32 1, %s24
    %p30 = scmp.ge.s32.totalorder %s29, 1
    %s31 = scalar_select %p30, 0, %s29
    %s32 = sadd.s32 1, %s23
    %s33 = scalar_select %p30, %s32, %s23
    %p34 = scmp.ge.s32.totalorder %s33, 2
    %s35 = scalar_select %p34, 0, %s33
    %s36 = ssub.s32 %s23, %s35
    %p37 = scmp.eq.s32.totalorder %s36, 0
    %s39 = sadd.s32 %s38, 1
    %s40 = scalar_select %p37, %s38, %s39
    %p43 = pneg %p37
    %p44 = scmp.eq.s32.totalorder %s16, 1
    %p45 = por %p43, %p44
    %p46 = scmp.ne.s32.totalorder %s38, %s41
    %p47 = scmp.eq.s32.totalorder %s16, 0
    %p48 = por %p46, %p47
    %p49 = scmp.ne.s32.totalorder %s38, %s41
    %p50 = scmp.eq.s32.totalorder %s21, 1
    %p51 = por %p49, %p50
    %p52 = scmp.ne.s32.totalorder %s41, %s42
    %p53 = scmp.eq.s32.totalorder %s21, 0
    %p54 = por %p52, %p53
    %p55 = scmp.ne.s32.totalorder %s41, %s42
    %p56 = scmp.eq.s32.totalorder %s22, 1
    %p57 = por %p55, %p56
    %p59 = scmp.ne.s32.totalorder %s42, %s58
    %p60 = scmp.eq.s32.totalorder %s22, 0
    %p61 = por %p59, %p60
    %s63 = sadd.s32 %s62, 1
    %p66 = scmp.eq.s32.totalorder %s16, 1
    %p67 = scmp.ne.s32.totalorder %s62, %s64
    %p68 = scmp.eq.s32.totalorder %s16, 0
    %p69 = por %p67, %p68
    %p70 = scmp.ne.s32.totalorder %s62, %s64
    %p71 = scmp.eq.s32.totalorder %s21, 1
    %p72 = por %p70, %p71
    %p73 = scmp.ne.s32.totalorder %s64, %s65
    %p74 = scmp.eq.s32.totalorder %s21, 0
    %p75 = por %p73, %p74
    %p76 = scmp.ne.s32.totalorder %s64, %s65
    %p77 = scmp.eq.s32.totalorder %s22, 1
    %p78 = por %p76, %p77
    %p80 = scmp.ne.s32.totalorder %s65, %s79
    %p81 = scmp.eq.s32.totalorder %s22, 0
    %p82 = por %p80, %p81
    %s84 = sadd.s32 %s83, 1
    %p87 = scmp.eq.s32.totalorder %s16, 1
    %p88 = scmp.ne.s32.totalorder %s83, %s85
    %p89 = scmp.eq.s32.totalorder %s16, 0
    %p90 = por %p88, %p89
    %p91 = scmp.ne.s32.totalorder %s83, %s85
    %p92 = scmp.eq.s32.totalorder %s21, 1
    %p93 = por %p91, %p92
    %p94 = scmp.ne.s32.totalorder %s85, %s86
    %p95 = scmp.eq.s32.totalorder %s21, 0
    %p96 = por %p94, %p95
    %p97 = scmp.ne.s32.totalorder %s85, %s86
    %p98 = scmp.eq.s32.totalorder %s22, 1
    %p99 = por %p97, %p98
    %p101 = scmp.ne.s32.totalorder %s86, %s100
    %p102 = scmp.eq.s32.totalorder %s22, 0
    %p103 = por %p101, %p102
    %s105 = sadd.s32 %s104, 1
    %p108 = scmp.eq.s32.totalorder %s16, 1
    %p109 = scmp.ne.s32.totalorder %s104, %s106
    %p110 = scmp.eq.s32.totalorder %s16, 0
    %p111 = por %p109, %p110
    %p112 = scmp.ne.s32.totalorder %s104, %s106
    %p113 = scmp.eq.s32.totalorder %s21, 1
    %p114 = por %p112, %p113
    %p115 = scmp.ne.s32.totalorder %s106, %s107
    %p116 = scmp.eq.s32.totalorder %s21, 0
    %p117 = por %p115, %p116
    %p118 = scmp.ne.s32.totalorder %s106, %s107
    %p119 = scmp.eq.s32.totalorder %s22, 1
    %p120 = por %p118, %p119
    %p122 = scmp.ne.s32.totalorder %s107, %s121
    %p123 = scmp.eq.s32.totalorder %s22, 0
    %p124 = por %p122, %p123
    %s126 = sadd.s32 %s125, 1
    %p129 = scmp.eq.s32.totalorder %s16, 1
    %p130 = scmp.ne.s32.totalorder %s125, %s127
    %p131 = scmp.eq.s32.totalorder %s16, 0
    %p132 = por %p130, %p131
    %p133 = scmp.ne.s32.totalorder %s125, %s127
    %p134 = scmp.eq.s32.totalorder %s21, 1
    %p135 = por %p133, %p134
    %p136 = scmp.ne.s32.totalorder %s127, %s128
    %p137 = scmp.eq.s32.totalorder %s21, 0
    %p138 = por %p136, %p137
    %p139 = scmp.ne.s32.totalorder %s127, %s128
    %p140 = scmp.eq.s32.totalorder %s22, 1
    %p141 = por %p139, %p140
    %p143 = scmp.ne.s32.totalorder %s128, %s142
    %p144 = scmp.eq.s32.totalorder %s22, 0
    %p145 = por %p143, %p144
    %s147 = sadd.s32 %s146, 1
    %p150 = scmp.eq.s32.totalorder %s16, 1
    %p151 = scmp.ne.s32.totalorder %s146, %s148
    %p152 = scmp.eq.s32.totalorder %s16, 0
    %p153 = por %p151, %p152
    %p154 = scmp.ne.s32.totalorder %s146, %s148
    %p155 = scmp.eq.s32.totalorder %s21, 1
    %p156 = por %p154, %p155
    %p157 = scmp.ne.s32.totalorder %s148, %s149
    %p158 = scmp.eq.s32.totalorder %s21, 0
    %p159 = por %p157, %p158
    %p160 = scmp.ne.s32.totalorder %s148, %s149
    %p161 = scmp.eq.s32.totalorder %s22, 1
    %p162 = por %p160, %p161
    %p164 = scmp.ne.s32.totalorder %s149, %s163
    %p165 = scmp.eq.s32.totalorder %s22, 0
    %p166 = por %p164, %p165
    %s168 = sadd.s32 %s167, 1
    %p171 = scmp.eq.s32.totalorder %s16, 1
    %p172 = scmp.ne.s32.totalorder %s167, %s169
    %p173 = scmp.eq.s32.totalorder %s16, 0
    %p174 = por %p172, %p173
    %p175 = scmp.ne.s32.totalorder %s167, %s169
    %p176 = scmp.eq.s32.totalorder %s21, 1
    %p177 = por %p175, %p176
    %p178 = scmp.ne.s32.totalorder %s169, %s170
    %p179 = scmp.eq.s32.totalorder %s21, 0
    %p180 = por %p178, %p179
    %p181 = scmp.ne.s32.totalorder %s169, %s170
    %p182 = scmp.eq.s32.totalorder %s22, 1
    %p183 = por %p181, %p182
    %p185 = scmp.ne.s32.totalorder %s170, %s184
    %p186 = scmp.eq.s32.totalorder %s22, 0
    %p187 = por %p185, %p186
    %s189 = sadd.s32 %s188, 1
    %p192 = scmp.eq.s32.totalorder %s16, 1
    %p193 = scmp.ne.s32.totalorder %s188, %s190
    %p194 = scmp.eq.s32.totalorder %s16, 0
    %p195 = por %p193, %p194
    %p196 = scmp.ne.s32.totalorder %s188, %s190
    %p197 = scmp.eq.s32.totalorder %s21, 1
    %p198 = por %p196, %p197
    %p199 = scmp.ne.s32.totalorder %s190, %s191
    %p200 = scmp.eq.s32.totalorder %s21, 0
    %p201 = por %p199, %p200
    %p202 = scmp.ne.s32.totalorder %s190, %s191
    %p203 = scmp.eq.s32.totalorder %s22, 1
    %p204 = por %p202, %p203
    %p206 = scmp.ne.s32.totalorder %s191, %s205
    %p207 = scmp.eq.s32.totalorder %s22, 0
    %p208 = por %p206, %p207
    %s210 = sadd.s32 %s209, 1
    %p213 = scmp.eq.s32.totalorder %s16, 1
    %p214 = scmp.ne.s32.totalorder %s209, %s211
    %p215 = scmp.eq.s32.totalorder %s16, 0
    %p216 = por %p214, %p215
    %p217 = scmp.ne.s32.totalorder %s209, %s211
    %p218 = scmp.eq.s32.totalorder %s21, 1
    %p219 = por %p217, %p218
    %p220 = scmp.ne.s32.totalorder %s211, %s212
    %p221 = scmp.eq.s32.totalorder %s21, 0
    %p222 = por %p220, %p221
    %p223 = scmp.ne.s32.totalorder %s211, %s212
    %p224 = scmp.eq.s32.totalorder %s22, 1
    %p225 = por %p223, %p224
    %p227 = scmp.ne.s32.totalorder %s212, %s226
    %p228 = scmp.eq.s32.totalorder %s22, 0
    %p229 = por %p227, %p228
    %s231 = sadd.s32 %s230, 1
    %p234 = scmp.eq.s32.totalorder %s16, 1
    %p235 = scmp.ne.s32.totalorder %s230, %s232
    %p236 = scmp.eq.s32.totalorder %s16, 0
    %p237 = por %p235, %p236
    %p238 = scmp.ne.s32.totalorder %s230, %s232
    %p239 = scmp.eq.s32.totalorder %s21, 1
    %p240 = por %p238, %p239
    %p241 = scmp.ne.s32.totalorder %s232, %s233
    %p242 = scmp.eq.s32.totalorder %s21, 0
    %p243 = por %p241, %p242
    %p244 = scmp.ne.s32.totalorder %s232, %s233
    %p245 = scmp.eq.s32.totalorder %s22, 1
    %p246 = por %p244, %p245
    %p248 = scmp.ne.s32.totalorder %s233, %s247
    %p249 = scmp.eq.s32.totalorder %s22, 0
    %p250 = por %p248, %p249
    %s251 = ssub.s32 %s23, %s35
    %s252 = ssub.s32 %s24, %s31
    %s253 = sor.u32 %s251, %s252
    %p254 = scmp.eq.s32.totalorder %s253, 0
    %s256 = sadd.s32 %s255, 1
    %s257 = scalar_select %p254, %s255, %s256
    %p260 = pneg %p254
    %p261 = scmp.eq.s32.totalorder %s16, 1
    %p262 = por %p260, %p261
    %p263 = scmp.ne.s32.totalorder %s255, %s258
    %p264 = scmp.eq.s32.totalorder %s16, 0
    %p265 = por %p263, %p264
    %p266 = scmp.ne.s32.totalorder %s255, %s258
    %p267 = scmp.eq.s32.totalorder %s21, 1
    %p268 = por %p266, %p267
    %p269 = scmp.ne.s32.totalorder %s258, %s259
    %p270 = scmp.eq.s32.totalorder %s21, 0
    %p271 = por %p269, %p270
    %p272 = scmp.ne.s32.totalorder %s258, %s259
    %p273 = scmp.eq.s32.totalorder %s22, 1
    %p274 = por %p272, %p273
    %p276 = scmp.ne.s32.totalorder %s259, %s275
    %p277 = scmp.eq.s32.totalorder %s22, 0
    %p278 = por %p276, %p277
    %p279 = scmp.le.s32.totalorder 1, %s16
    %p280 = scmp.lt.s32.totalorder %s16, 3
    %p281 = pnand %p279, %p280
    %p282 = pneg %p281
    // Predicated region
    $region9: #{bottleneck_layer.2} parent=5 // pred_check
      _
    $region10: #{bottleneck_layer.2} parent=5 // pred_check_branch
      %284 = sbr.rel (%p281) target = $region12
    $region11: #{bottleneck_layer.2} parent=5 // pred_region
      %s285 = ssub.s32 %s16, 1
      // Predicated region
      $region13: #{bottleneck_layer.2} parent=11 // pred_check
        %p286 = pneg %p75
      $region14: #{bottleneck_layer.2} parent=11 // pred_check_branch
        %288 = sbr.rel (%p286) target = $region16
      $region15: #{bottleneck_layer.2} parent=11 // pred_region
        _
      $region16: #{bottleneck_layer.2} parent=11 // pred_fallthru
        _
      // Predicated region
      $region17: #{bottleneck_layer.2} parent=11 // pred_check
        %p289 = pneg %p96
      $region18: #{bottleneck_layer.2} parent=11 // pred_check_branch
        %291 = sbr.rel (%p289) target = $region20
      $region19: #{bottleneck_layer.2} parent=11 // pred_region
        _
      $region20: #{bottleneck_layer.2} parent=11 // pred_fallthru
        _
      // Predicated region
      $region21: #{bottleneck_layer.2} parent=11 // pred_check
        %p292 = pneg %p117
      $region22: #{bottleneck_layer.2} parent=11 // pred_check_branch
        %294 = sbr.rel (%p292) target = $region24
      $region23: #{bottleneck_layer.2} parent=11 // pred_region
        _
      $region24: #{bottleneck_layer.2} parent=11 // pred_fallthru
        _
      // Predicated region
      $region25: #{bottleneck_layer.2} parent=11 // pred_check
        %p295 = pneg %p138
      $region26: #{bottleneck_layer.2} parent=11 // pred_check_branch
        %297 = sbr.rel (%p295) target = $region28
      $region27: #{bottleneck_layer.2} parent=11 // pred_region
        _
      $region28: #{bottleneck_layer.2} parent=11 // pred_fallthru
        _
      // Predicated region
      $region29: #{bottleneck_layer.2} parent=11 // pred_check
        %p298 = pneg %p159
      $region30: #{bottleneck_layer.2} parent=11 // pred_check_branch
        %300 = sbr.rel (%p298) target = $region32
      $region31: #{bottleneck_layer.2} parent=11 // pred_region
        _
      $region32: #{bottleneck_layer.2} parent=11 // pred_fallthru
        _
      // Predicated region
      $region33: #{bottleneck_layer.2} parent=11 // pred_check
        %p301 = pneg %p180
      $region34: #{bottleneck_layer.2} parent=11 // pred_check_branch
        %303 = sbr.rel (%p301) target = $region36
      $region35: #{bottleneck_layer.2} parent=11 // pred_region
        _
      $region36: #{bottleneck_layer.2} parent=11 // pred_fallthru
        _
      // Predicated region
      $region37: #{bottleneck_layer.2} parent=11 // pred_check
        %p304 = pneg %p201
      $region38: #{bottleneck_layer.2} parent=11 // pred_check_branch
        %306 = sbr.rel (%p304) target = $region40
      $region39: #{bottleneck_layer.2} parent=11 // pred_region
        _
      $region40: #{bottleneck_layer.2} parent=11 // pred_fallthru
        _
      // Predicated region
      $region41: #{bottleneck_layer.2} parent=11 // pred_check
        %p307 = pneg %p222
      $region42: #{bottleneck_layer.2} parent=11 // pred_check_branch
        %309 = sbr.rel (%p307) target = $region44
      $region43: #{bottleneck_layer.2} parent=11 // pred_region
        _
      $region44: #{bottleneck_layer.2} parent=11 // pred_fallthru
        _
      // Predicated region
      $region45: #{bottleneck_layer.2} parent=11 // pred_check
        %p310 = pneg %p243
      $region46: #{bottleneck_layer.2} parent=11 // pred_check_branch
        %312 = sbr.rel (%p310) target = $region48
      $region47: #{bottleneck_layer.2} parent=11 // pred_region
        _
      $region48: #{bottleneck_layer.2} parent=11 // pred_fallthru
        _
    $region12: #{bottleneck_layer.2} parent=5 // pred_fallthru
      _
    %p313 = scmp.lt.s32.totalorder %s16, 2
    // Predicated region
    $region49: #{bottleneck_layer.2} parent=5 // pred_check
      %p314 = pneg %p313
    $region50: #{bottleneck_layer.2} parent=5 // pred_check_branch
      %316 = sbr.rel (%p314) target = $region52
    $region51: #{bottleneck_layer.2} parent=5 // pred_region
      // Predicated region
      $region53: #{bottleneck_layer.2} parent=51 // pred_check
        %p317 = pneg %p48
      $region54: #{bottleneck_layer.2} parent=51 // pred_check_branch
        %319 = sbr.rel (%p317) target = $region56
      $region55: #{bottleneck_layer.2} parent=51 // pred_region
        %p320 = scmp.lt.s32.totalorder %s23, 1
        %s321 = scalar_select %p320, %s23, 1
        %s322 = smul.addr %s321, 10
        %s323 = smul.addr %s322, 4
        %s324 = scalar_lea.vmem %s0, %s323
      $region56: #{bottleneck_layer.2} parent=51 // pred_fallthru
        _
    $region52: #{bottleneck_layer.2} parent=5 // pred_fallthru
      _
    %p325 = scmp.le.s32.totalorder 1, %s16
    %p326 = scmp.lt.s32.totalorder %s16, 3
    %p327 = pnand %p325, %p326
    %p328 = pneg %p327
    // Predicated region
    $region57: #{bottleneck_layer.2} parent=5 // pred_check
      _
    $region58: #{bottleneck_layer.2} parent=5 // pred_check_branch
      %330 = sbr.rel (%p327) target = $region60
    $region59: #{bottleneck_layer.2} parent=5 // pred_region
      %s331 = ssub.s32 %s16, 1
      %p332 = scmp.lt.s32.totalorder %s25, 1
      %s333 = scalar_select %p332, %s25, 1
      %s334 = smul.addr %s333, 10
      %s335 = smul.addr %s334, 4
      %s336 = scalar_lea.vmem %s0, %s335
      %p337 = pneg %p54
      %p338 = pneg %p51
      %p339 = pneg %p75
      %p340 = pneg %p72
      %p341 = pneg %p96
      %p342 = pneg %p93
      %p343 = pneg %p117
      %p344 = pneg %p114
      %p345 = pneg %p138
      %p346 = pneg %p135
      %p347 = pneg %p159
      %p348 = pneg %p156
      %p349 = pneg %p180
      %p350 = pneg %p177
      %p351 = pneg %p201
      %p352 = pneg %p198
      %p353 = pneg %p222
      %p354 = pneg %p219
      %p355 = pneg %p243
      %p356 = pneg %p240
      %p357 = pneg %p271
      %p358 = pneg %p268
      %s359 = smul.u32 8, %s26
      %p360 = scmp.lt.s32.totalorder %s25, 1
      %s361 = scalar_select %p360, %s25, 1
      %p362 = scmp.lt.s32.totalorder %s359, 7
      %s363 = scalar_select %p362, %s359, 7
      %s364 = smul.addr %s361, 8
      %s365 = sadd.s32 %s363, %s364
      %s366 = smul.addr %s365, 4
      %s367 = scalar_lea.vmem %s10, %s366
      %p368 = scmp.lt.s32.totalorder %s25, 1
      %s369 = scalar_select %p368, %s25, 1
      %s370 = smul.addr %s369, 10
      %s371 = smul.addr %s370, 4
      %s372 = scalar_lea.vmem %s0, %s371
      %s373 = smul.u32 8, %s26
      %p374 = scmp.lt.s32.totalorder %s25, 1
      %s375 = scalar_select %p374, %s25, 1
      %p376 = scmp.lt.s32.totalorder %s373, 7
      %s377 = scalar_select %p376, %s373, 7
      %s378 = smul.addr %s375, 8
      %s379 = sadd.s32 %s377, %s378
      %s380 = smul.addr %s379, 4
      %s381 = scalar_lea.vmem %s10, %s380
      %s382 = smul.u32 8, %s26
      %vm384 = vcmask 261120
      %385 = vst.msk [vmem:[#allocation2] sm:$0xff] %vm384, 0.0
      %vm386 = vcmask 254976
      %387 = vst.msk [vmem:[#allocation2 + $0x8] sm:$0x3] %vm386, 0.0
      %388 = vst.msk [vmem:[#allocation2 + $0x10] sm:$0xff] %vm384, 0.0
      %389 = vst.msk [vmem:[#allocation2 + $0x18] sm:$0x3] %vm386, 0.0
      %390 = vst.msk [vmem:[#allocation2 + $0x20] sm:$0xff] %vm384, 0.0
      %391 = vst.msk [vmem:[#allocation2 + $0x28] sm:$0x3] %vm386, 0.0
      %392 = vst.msk [vmem:[#allocation2 + $0x30] sm:$0xff] %vm384, 0.0
      %393 = vst.msk [vmem:[#allocation2 + $0x38] sm:$0x3] %vm386, 0.0
      %394 = vst.msk [vmem:[#allocation2 + $0x40] sm:$0xff] %vm384, 0.0
      %395 = vst.msk [vmem:[#allocation2 + $0x48] sm:$0x3] %vm386, 0.0
      %396 = vst.msk [vmem:[#allocation2 + $0x50] sm:$0xff] %vm384, 0.0
      %397 = vst.msk [vmem:[#allocation2 + $0x58] sm:$0x3] %vm386, 0.0
      %398 = vst.msk [vmem:[#allocation2 + $0x60] sm:$0xff] %vm384, 0.0
      %399 = vst.msk [vmem:[#allocation2 + $0x68] sm:$0x3] %vm386, 0.0
      %400 = vst.msk [vmem:[#allocation2 + $0x70] sm:$0xff] %vm384, 0.0
      %401 = vst.msk [vmem:[#allocation2 + $0x78] sm:$0x3] %vm386, 0.0
      %402 = vst.msk [vmem:[#allocation2 + $0x80] sm:$0xff] %vm384, 0.0
      %403 = vst.msk [vmem:[#allocation2 + $0x88] sm:$0x3] %vm386, 0.0
      %404 = vst.msk [vmem:[#allocation2 + $0x90] sm:$0xff] %vm384, 0.0
      %405 = vst.msk [vmem:[#allocation2 + $0x98] sm:$0x3] %vm386, 0.0
      %s406 = smul.u32 %s26, 8
      %s407 = smul.addr %s406, 4
      %s408 = scalar_lea.vmem %s372, %s407
      %v409 = vld [vmem:[%s408] sm:$0xf]
      %v410 = vld [vmem:[%s408 + $0x4] sm:$0xf]
      %v411 = vld [vmem:[%s408 + $0x8] sm:$0xf]
      %v412 = vld [vmem:[%s408 + $0xc] sm:$0xf]
      %v413 = vld [vmem:[%s408 + $0x10] sm:$0xf]
      %v414 = vld [vmem:[%s408 + $0x14] sm:$0xf]
      %v415 = vld [vmem:[%s408 + $0x18] sm:$0xf]
      %v416 = vld [vmem:[%s408 + $0x1c] sm:$0xf]
      %v417 = vld [vmem:[%s408 + $0x20] sm:$0xf]
      %v418 = vld [vmem:[%s408 + $0x24] sm:$0xf]
      %v419 = vld [vmem:[%s1] sm:$0xf]
      %v430 = vunpack.c.l.b16 %v409
      %v431 = vunpack.c.l.b16 %v410
      %v432 = vunpack.c.l.b16 %v411
      %v433 = vunpack.c.l.b16 %v412
      %v434 = vunpack.c.l.b16 %v413
      %v435 = vunpack.c.l.b16 %v414
      %v436 = vunpack.c.l.b16 %v415
      %v437 = vunpack.c.l.b16 %v416
      %v438 = vunpack.c.l.b16 %v417
      %v439 = vunpack.c.l.b16 %v418
      %v440 = vpack.c.b16 %v431, %v430
      %v441 = vpack.c.b16 %v433, %v432
      %v442 = vpack.c.b16 %v435, %v434
      %v443 = vpack.c.b16 %v437, %v436
      %v444 = vpack.c.b16 %v439, %v438
      %vm445 = vcmask 64512
      %v447 = vsel %vm445, %v440, 0
      %v450 = vsel %vm445, %v441, 0
      %v453 = vsel %vm445, %v442, 0
      %v456 = vsel %vm445, %v443, 0
      %v459 = vsel %vm445, %v444, 0
      %vm461 = vcmask 1043456
      %v463 = vsel %vm461, %v419, 0
      %465 = vmatpush.bf16.msra.mxu0 0
      %466 = vmatpush.bf16.msra.mxu0 0
      %467 = vmatpush.bf16.msra.mxu0 0
      %468 = vmatpush.bf16.msra.mxu0 0
      %469 = vmatpush.bf16.msra.mxu0 0
      %470 = vmatpush.bf16.msra.mxu0 0
      %471 = vmatpush.bf16.msra.mxu0 0
      %472 = vmatpush.bf16.msra.mxu0 %v463
      %473 = vmatmul.bf16.gmra.mxu0 %v447
      %v474 = vpop.f32.mrf.mxu0
      %v475 = vadd.f32 0.0, %v474
      %v476 = vpop.f32.mrf.mxu0
      %v477 = vadd.f32 0.0, %v476
      %478 = vmatmul.bf16.gmra.mxu0 %v450
      %v479 = vpop.f32.mrf.mxu0
      %v480 = vadd.f32 0.0, %v479
      %v481 = vpop.f32.mrf.mxu0
      %v482 = vadd.f32 0.0, %v481
      %483 = vmatmul.bf16.gmra.mxu0 %v453
      %v484 = vpop.f32.mrf.mxu0
      %v485 = vadd.f32 0.0, %v484
      %v486 = vpop.f32.mrf.mxu0
      %v487 = vadd.f32 0.0, %v486
      %488 = vmatmul.bf16.gmra.mxu0 %v456
      %v489 = vpop.f32.mrf.mxu0
      %v490 = vadd.f32 0.0, %v489
      %v491 = vpop.f32.mrf.mxu0
      %v492 = vadd.f32 0.0, %v491
      %493 = vmatmul.bf16.gmra.mxu0 %v459
      %v494 = vpop.f32.mrf.mxu0
      %v495 = vadd.f32 0.0, %v494
      %v496 = vpop.f32.mrf.mxu0
      %v497 = vadd.f32 0.0, %v496
      %498 = vdwg.mxu0
      %v499 = vld [vmem:[%s2] sm:$0x1]
      %v501 = vperm.slane %v499, 0
      %v503 = vmul.f32 %v475, %v501
      %v504 = vmul.f32 %v477, %v501
      %v505 = vmul.f32 %v480, %v501
      %v506 = vmul.f32 %v482, %v501
      %v507 = vmul.f32 %v485, %v501
      %v508 = vmul.f32 %v487, %v501
      %v509 = vmul.f32 %v490, %v501
      %v510 = vmul.f32 %v492, %v501
      %v511 = vmul.f32 %v495, %v501
      %v512 = vmul.f32 %v497, %v501
      %v513 = vld [vmem:[%s3] sm:$0x1]
      %v515 = vperm.slane %v513, 0
      %v517 = vadd.f32 %v503, %v515
      %v518 = vadd.f32 %v504, %v515
      %v519 = vadd.f32 %v505, %v515
      %v520 = vadd.f32 %v506, %v515
      %v521 = vadd.f32 %v507, %v515
      %v522 = vadd.f32 %v508, %v515
      %v523 = vadd.f32 %v509, %v515
      %v524 = vadd.f32 %v510, %v515
      %v525 = vadd.f32 %v511, %v515
      %v526 = vadd.f32 %v512, %v515
      %v527 = vmax.f32 %v517, 0.0
      %v528 = vmax.f32 %v518, 0.0
      %v529 = vmax.f32 %v519, 0.0
      %v530 = vmax.f32 %v520, 0.0
      %v531 = vmax.f32 %v521, 0.0
      %v532 = vmax.f32 %v522, 0.0
      %v533 = vmax.f32 %v523, 0.0
      %v534 = vmax.f32 %v524, 0.0
      %v535 = vmax.f32 %v525, 0.0
      %v536 = vmax.f32 %v526, 0.0
      %v537 = vmin.f32 %v527, 6.0
      %v538 = vmin.f32 %v528, 6.0
      %v539 = vmin.f32 %v529, 6.0
      %v540 = vmin.f32 %v530, 6.0
      %v541 = vmin.f32 %v531, 6.0
      %v542 = vmin.f32 %v532, 6.0
      %v543 = vmin.f32 %v533, 6.0
      %v544 = vmin.f32 %v534, 6.0
      %v545 = vmin.f32 %v535, 6.0
      %v546 = vmin.f32 %v536, 6.0
      %547 = vst.msk [vmem:[#allocation2 + $0x1] sm:$0xff] %vm384, %v537
      %548 = vst.msk [vmem:[#allocation2 + $0x11] sm:$0xff] %vm384, %v538
      %549 = vst.msk [vmem:[#allocation2 + $0x21] sm:$0xff] %vm384, %v539
      %550 = vst.msk [vmem:[#allocation2 + $0x31] sm:$0xff] %vm384, %v540
      %551 = vst.msk [vmem:[#allocation2 + $0x41] sm:$0xff] %vm384, %v541
      %552 = vst.msk [vmem:[#allocation2 + $0x51] sm:$0xff] %vm384, %v542
      %553 = vst.msk [vmem:[#allocation2 + $0x61] sm:$0xff] %vm384, %v543
      %554 = vst.msk [vmem:[#allocation2 + $0x71] sm:$0xff] %vm384, %v544
      %555 = vst.msk [vmem:[#allocation2 + $0x81] sm:$0xff] %vm384, %v545
      %556 = vst.msk [vmem:[#allocation2 + $0x91] sm:$0xff] %vm384, %v546
      %p557 = scmp.eq.s32.totalorder %s26, 0
      // Predicated region
      $region61: #{bottleneck_layer.2} parent=59 // pred_check
        %p558 = pneg %p557
      $region62: #{bottleneck_layer.2} parent=59 // pred_check_branch
        %560 = sbr.rel (%p558) target = $region64
      $region63: #{bottleneck_layer.2} parent=59 // pred_region
        %561 = vst.msk [vmem:[#allocation2] sm:$0xff] %vm384, 0.0
        %562 = vst.msk [vmem:[#allocation2 + $0x8] sm:$0x3] %vm386, 0.0
        %s563 = scalar_lea.vmem [#allocation2], 144
        %564 = vst.msk [vmem:[%s563] sm:$0xff] %vm384, 0.0
        %565 = vst.msk [vmem:[%s563 + $0x8] sm:$0x3] %vm386, 0.0
      $region64: #{bottleneck_layer.2} parent=59 // pred_fallthru
        _
      %v566 = vld [vmem:[#allocation2] sm:$0xff]
      %v567 = vld [vmem:[#allocation2 + $0x10] sm:$0xff]
      %v568 = vld [vmem:[#allocation2 + $0x20] sm:$0xff]
      %v569 = vld [vmem:[#allocation2 + $0x30] sm:$0xff]
      %v570 = vld [vmem:[#allocation2 + $0x40] sm:$0xff]
      %v571 = vld [vmem:[#allocation2 + $0x50] sm:$0xff]
      %v572 = vld [vmem:[#allocation2 + $0x60] sm:$0xff]
      %v573 = vld [vmem:[#allocation2 + $0x70] sm:$0xff]
      %v574 = vld [vmem:[%s4] sm:$0x1]
      %v575 = vunpack.c.l.bf16 %v574
      %v576 = vperm.slane %v575, 0
      %v577 = vmul.f32 %v566, %v576
      %v578 = vmul.f32 %v567, %v576
      %v579 = vmul.f32 %v568, %v576
      %v580 = vmul.f32 %v569, %v576
      %v581 = vmul.f32 %v570, %v576
      %v582 = vmul.f32 %v571, %v576
      %v583 = vmul.f32 %v572, %v576
      %v584 = vmul.f32 %v573, %v576
      %v585 = vadd.f32 %v577, 0.0
      %v586 = vadd.f32 %v578, 0.0
      %v587 = vadd.f32 %v579, 0.0
      %v588 = vadd.f32 %v580, 0.0
      %v589 = vadd.f32 %v581, 0.0
      %v590 = vadd.f32 %v582, 0.0
      %v591 = vadd.f32 %v583, 0.0
      %v592 = vadd.f32 %v584, 0.0
      %v593 = vld [vmem:[#allocation2 + $0x1] sm:$0xff]
      %v594 = vld [vmem:[#allocation2 + $0x11] sm:$0xff]
      %v595 = vld [vmem:[#allocation2 + $0x21] sm:$0xff]
      %v596 = vld [vmem:[#allocation2 + $0x31] sm:$0xff]
      %v597 = vld [vmem:[#allocation2 + $0x41] sm:$0xff]
      %v598 = vld [vmem:[#allocation2 + $0x51] sm:$0xff]
      %v599 = vld [vmem:[#allocation2 + $0x61] sm:$0xff]
      %v600 = vld [vmem:[#allocation2 + $0x71] sm:$0xff]
      %v601 = vperm.slane %v575, 1
      %v602 = vmul.f32 %v593, %v601
      %v603 = vmul.f32 %v594, %v601
      %v604 = vmul.f32 %v595, %v601
      %v605 = vmul.f32 %v596, %v601
      %v606 = vmul.f32 %v597, %v601
      %v607 = vmul.f32 %v598, %v601
      %v608 = vmul.f32 %v599, %v601
      %v609 = vmul.f32 %v600, %v601
      %v610 = vadd.f32 %v585, %v602
      %v611 = vadd.f32 %v586, %v603
      %v612 = vadd.f32 %v587, %v604
      %v613 = vadd.f32 %v588, %v605
      %v614 = vadd.f32 %v589, %v606
      %v615 = vadd.f32 %v590, %v607
      %v616 = vadd.f32 %v591, %v608
      %v617 = vadd.f32 %v592, %v609
      %v618 = vld [vmem:[#allocation2 + $0x2] sm:$0xff]
      %v619 = vld [vmem:[#allocation2 + $0x12] sm:$0xff]
      %v620 = vld [vmem:[#allocation2 + $0x22] sm:$0xff]
      %v621 = vld [vmem:[#allocation2 + $0x32] sm:$0xff]
      %v622 = vld [vmem:[#allocation2 + $0x42] sm:$0xff]
      %v623 = vld [vmem:[#allocation2 + $0x52] sm:$0xff]
      %v624 = vld [vmem:[#allocation2 + $0x62] sm:$0xff]
      %v625 = vld [vmem:[#allocation2 + $0x72] sm:$0xff]
      %v626 = vld [vmem:[%s4] sm:$0x2]
      %v627 = vunpack.c.l.bf16 %v626
      %v628 = vperm.slane %v627, 2
      %v629 = vmul.f32 %v618, %v628
      %v630 = vmul.f32 %v619, %v628
      %v631 = vmul.f32 %v620, %v628
      %v632 = vmul.f32 %v621, %v628
      %v633 = vmul.f32 %v622, %v628
      %v634 = vmul.f32 %v623, %v628
      %v635 = vmul.f32 %v624, %v628
      %v636 = vmul.f32 %v625, %v628
      %v637 = vadd.f32 %v610, %v629
      %v638 = vadd.f32 %v611, %v630
      %v639 = vadd.f32 %v612, %v631
      %v640 = vadd.f32 %v613, %v632
      %v641 = vadd.f32 %v614, %v633
      %v642 = vadd.f32 %v615, %v634
      %v643 = vadd.f32 %v616, %v635
      %v644 = vadd.f32 %v617, %v636
      %s645 = scalar_lea.vmem [#allocation2], 16
      %v646 = vld [vmem:[%s645] sm:$0xff]
      %v647 = vld [vmem:[%s645 + $0x10] sm:$0xff]
      %v648 = vld [vmem:[%s645 + $0x20] sm:$0xff]
      %v649 = vld [vmem:[%s645 + $0x30] sm:$0xff]
      %v650 = vld [vmem:[%s645 + $0x40] sm:$0xff]
      %v651 = vld [vmem:[%s645 + $0x50] sm:$0xff]
      %v652 = vld [vmem:[%s645 + $0x60] sm:$0xff]
      %v653 = vld [vmem:[%s645 + $0x70] sm:$0xff]
      %s654 = scalar_lea.vmem %s4, 2
      %v655 = vld [vmem:[%s654] sm:$0x1]
      %v656 = vunpack.c.l.bf16 %v655
      %v657 = vperm.slane %v656, 0
      %v658 = vmul.f32 %v646, %v657
      %v659 = vmul.f32 %v647, %v657
      %v660 = vmul.f32 %v648, %v657
      %v661 = vmul.f32 %v649, %v657
      %v662 = vmul.f32 %v650, %v657
      %v663 = vmul.f32 %v651, %v657
      %v664 = vmul.f32 %v652, %v657
      %v665 = vmul.f32 %v653, %v657
      %v666 = vadd.f32 %v637, %v658
      %v667 = vadd.f32 %v638, %v659
      %v668 = vadd.f32 %v639, %v660
      %v669 = vadd.f32 %v640, %v661
      %v670 = vadd.f32 %v641, %v662
      %v671 = vadd.f32 %v642, %v663
      %v672 = vadd.f32 %v643, %v664
      %v673 = vadd.f32 %v644, %v665
      %v674 = vld [vmem:[%s645 + $0x1] sm:$0xff]
      %v675 = vld [vmem:[%s645 + $0x11] sm:$0xff]
      %v676 = vld [vmem:[%s645 + $0x21] sm:$0xff]
      %v677 = vld [vmem:[%s645 + $0x31] sm:$0xff]
      %v678 = vld [vmem:[%s645 + $0x41] sm:$0xff]
      %v679 = vld [vmem:[%s645 + $0x51] sm:$0xff]
      %v680 = vld [vmem:[%s645 + $0x61] sm:$0xff]
      %v681 = vld [vmem:[%s645 + $0x71] sm:$0xff]
      %v682 = vperm.slane %v656, 1
      %v683 = vmul.f32 %v674, %v682
      %v684 = vmul.f32 %v675, %v682
      %v685 = vmul.f32 %v676, %v682
      %v686 = vmul.f32 %v677, %v682
      %v687 = vmul.f32 %v678, %v682
      %v688 = vmul.f32 %v679, %v682
      %v689 = vmul.f32 %v680, %v682
      %v690 = vmul.f32 %v681, %v682
      %v691 = vadd.f32 %v666, %v683
      %v692 = vadd.f32 %v667, %v684
      %v693 = vadd.f32 %v668, %v685
      %v694 = vadd.f32 %v669, %v686
      %v695 = vadd.f32 %v670, %v687
      %v696 = vadd.f32 %v671, %v688
      %v697 = vadd.f32 %v672, %v689
      %v698 = vadd.f32 %v673, %v690
      %v699 = vld [vmem:[%s645 + $0x2] sm:$0xff]
      %v700 = vld [vmem:[%s645 + $0x12] sm:$0xff]
      %v701 = vld [vmem:[%s645 + $0x22] sm:$0xff]
      %v702 = vld [vmem:[%s645 + $0x32] sm:$0xff]
      %v703 = vld [vmem:[%s645 + $0x42] sm:$0xff]
      %v704 = vld [vmem:[%s645 + $0x52] sm:$0xff]
      %v705 = vld [vmem:[%s645 + $0x62] sm:$0xff]
      %v706 = vld [vmem:[%s645 + $0x72] sm:$0xff]
      %v707 = vld [vmem:[%s654] sm:$0x2]
      %v708 = vunpack.c.l.bf16 %v707
      %v709 = vperm.slane %v708, 2
      %v710 = vmul.f32 %v699, %v709
      %v711 = vmul.f32 %v700, %v709
      %v712 = vmul.f32 %v701, %v709
      %v713 = vmul.f32 %v702, %v709
      %v714 = vmul.f32 %v703, %v709
      %v715 = vmul.f32 %v704, %v709
      %v716 = vmul.f32 %v705, %v709
      %v717 = vmul.f32 %v706, %v709
      %v718 = vadd.f32 %v691, %v710
      %v719 = vadd.f32 %v692, %v711
      %v720 = vadd.f32 %v693, %v712
      %v721 = vadd.f32 %v694, %v713
      %v722 = vadd.f32 %v695, %v714
      %v723 = vadd.f32 %v696, %v715
      %v724 = vadd.f32 %v697, %v716
      %v725 = vadd.f32 %v698, %v717
      %s726 = scalar_lea.vmem [#allocation2], 32
      %v727 = vld [vmem:[%s726] sm:$0xff]
      %v728 = vld [vmem:[%s726 + $0x10] sm:$0xff]
      %v729 = vld [vmem:[%s726 + $0x20] sm:$0xff]
      %v730 = vld [vmem:[%s726 + $0x30] sm:$0xff]
      %v731 = vld [vmem:[%s726 + $0x40] sm:$0xff]
      %v732 = vld [vmem:[%s726 + $0x50] sm:$0xff]
      %v733 = vld [vmem:[%s726 + $0x60] sm:$0xff]
      %v734 = vld [vmem:[%s726 + $0x70] sm:$0xff]
      %s735 = scalar_lea.vmem %s4, 4
      %v736 = vld [vmem:[%s735] sm:$0x1]
      %v737 = vunpack.c.l.bf16 %v736
      %v738 = vperm.slane %v737, 0
      %v739 = vmul.f32 %v727, %v738
      %v740 = vmul.f32 %v728, %v738
      %v741 = vmul.f32 %v729, %v738
      %v742 = vmul.f32 %v730, %v738
      %v743 = vmul.f32 %v731, %v738
      %v744 = vmul.f32 %v732, %v738
      %v745 = vmul.f32 %v733, %v738
      %v746 = vmul.f32 %v734, %v738
      %v747 = vadd.f32 %v718, %v739
      %v748 = vadd.f32 %v719, %v740
      %v749 = vadd.f32 %v720, %v741
      %v750 = vadd.f32 %v721, %v742
      %v751 = vadd.f32 %v722, %v743
      %v752 = vadd.f32 %v723, %v744
      %v753 = vadd.f32 %v724, %v745
      %v754 = vadd.f32 %v725, %v746
      %v755 = vld [vmem:[%s726 + $0x1] sm:$0xff]
      %v756 = vld [vmem:[%s726 + $0x11] sm:$0xff]
      %v757 = vld [vmem:[%s726 + $0x21] sm:$0xff]
      %v758 = vld [vmem:[%s726 + $0x31] sm:$0xff]
      %v759 = vld [vmem:[%s726 + $0x41] sm:$0xff]
      %v760 = vld [vmem:[%s726 + $0x51] sm:$0xff]
      %v761 = vld [vmem:[%s726 + $0x61] sm:$0xff]
      %v762 = vld [vmem:[%s726 + $0x71] sm:$0xff]
      %v763 = vperm.slane %v737, 1
      %v764 = vmul.f32 %v755, %v763
      %v765 = vmul.f32 %v756, %v763
      %v766 = vmul.f32 %v757, %v763
      %v767 = vmul.f32 %v758, %v763
      %v768 = vmul.f32 %v759, %v763
      %v769 = vmul.f32 %v760, %v763
      %v770 = vmul.f32 %v761, %v763
      %v771 = vmul.f32 %v762, %v763
      %v772 = vadd.f32 %v747, %v764
      %v773 = vadd.f32 %v748, %v765
      %v774 = vadd.f32 %v749, %v766
      %v775 = vadd.f32 %v750, %v767
      %v776 = vadd.f32 %v751, %v768
      %v777 = vadd.f32 %v752, %v769
      %v778 = vadd.f32 %v753, %v770
      %v779 = vadd.f32 %v754, %v771
      %v780 = vld [vmem:[%s726 + $0x2] sm:$0xff]
      %v781 = vld [vmem:[%s726 + $0x12] sm:$0xff]
      %v782 = vld [vmem:[%s726 + $0x22] sm:$0xff]
      %v783 = vld [vmem:[%s726 + $0x32] sm:$0xff]
      %v784 = vld [vmem:[%s726 + $0x42] sm:$0xff]
      %v785 = vld [vmem:[%s726 + $0x52] sm:$0xff]
      %v786 = vld [vmem:[%s726 + $0x62] sm:$0xff]
      %v787 = vld [vmem:[%s726 + $0x72] sm:$0xff]
      %v788 = vld [vmem:[%s735] sm:$0x2]
      %v789 = vunpack.c.l.bf16 %v788
      %v790 = vperm.slane %v789, 2
      %v791 = vmul.f32 %v780, %v790
      %v792 = vmul.f32 %v781, %v790
      %v793 = vmul.f32 %v782, %v790
      %v794 = vmul.f32 %v783, %v790
      %v795 = vmul.f32 %v784, %v790
      %v796 = vmul.f32 %v785, %v790
      %v797 = vmul.f32 %v786, %v790
      %v798 = vmul.f32 %v787, %v790
      %v799 = vadd.f32 %v772, %v791
      %v800 = vadd.f32 %v773, %v792
      %v801 = vadd.f32 %v774, %v793
      %v802 = vadd.f32 %v775, %v794
      %v803 = vadd.f32 %v776, %v795
      %v804 = vadd.f32 %v777, %v796
      %v805 = vadd.f32 %v778, %v797
      %v806 = vadd.f32 %v779, %v798
      %v807 = vld [vmem:[%s5] sm:$0x1]
      %v809 = vperm.slane %v807, 0
      %v811 = vmul.f32 %v799, %v809
      %v812 = vmul.f32 %v800, %v809
      %v813 = vmul.f32 %v801, %v809
      %v814 = vmul.f32 %v802, %v809
      %v815 = vmul.f32 %v803, %v809
      %v816 = vmul.f32 %v804, %v809
      %v817 = vmul.f32 %v805, %v809
      %v818 = vmul.f32 %v806, %v809
      %v819 = vld [vmem:[%s6] sm:$0x1]
      %v821 = vperm.slane %v819, 0
      %v823 = vadd.f32 %v811, %v821
      %v824 = vadd.f32 %v812, %v821
      %v825 = vadd.f32 %v813, %v821
      %v826 = vadd.f32 %v814, %v821
      %v827 = vadd.f32 %v815, %v821
      %v828 = vadd.f32 %v816, %v821
      %v829 = vadd.f32 %v817, %v821
      %v830 = vadd.f32 %v818, %v821
      %v831 = vmax.f32 %v823, 0.0
      %v832 = vmax.f32 %v824, 0.0
      %v833 = vmax.f32 %v825, 0.0
      %v834 = vmax.f32 %v826, 0.0
      %v835 = vmax.f32 %v827, 0.0
      %v836 = vmax.f32 %v828, 0.0
      %v837 = vmax.f32 %v829, 0.0
      %v838 = vmax.f32 %v830, 0.0
      %v839 = vmin.f32 %v831, 6.0
      %v840 = vmin.f32 %v832, 6.0
      %v841 = vmin.f32 %v833, 6.0
      %v842 = vmin.f32 %v834, 6.0
      %v843 = vmin.f32 %v835, 6.0
      %v844 = vmin.f32 %v836, 6.0
      %v845 = vmin.f32 %v837, 6.0
      %v846 = vmin.f32 %v838, 6.0
      %v847 = vpack.c.bf16 %v840, %v839
      %v848 = vpack.c.bf16 %v842, %v841
      %v849 = vpack.c.bf16 %v844, %v843
      %v850 = vpack.c.bf16 %v846, %v845
      %v851 = vld [vmem:[%s7] sm:$0xf]
      %v852 = vld [vmem:[%s7 + $0x4] sm:$0xf]
      %v853 = vld [vmem:[%s7 + $0x8] sm:$0xf]
      %v854 = vld [vmem:[%s7 + $0xc] sm:$0xf]
      %v859 = vunpack.c.l.b16 %v851
      %v860 = vunpack.c.l.b16 %v852
      %v861 = vunpack.c.l.b16 %v853
      %v862 = vunpack.c.l.b16 %v854
      %v863 = vpack.c.b16 %v860, %v859
      %v864 = vpack.c.b16 %v862, %v861
      %v868 = vsel %vm384, %v847, 0
      %v871 = vsel %vm384, %v848, 0
      %v874 = vsel %vm384, %v849, 0
      %v877 = vsel %vm384, %v850, 0
      %879 = vmatpush.bf16.msra.mxu0 0
      %880 = vmatpush.bf16.msra.mxu0 0
      %881 = vmatpush.bf16.msra.mxu0 0
      %882 = vmatpush.bf16.msra.mxu0 0
      %883 = vmatpush.bf16.msra.mxu0 0
      %884 = vmatpush.bf16.msra.mxu0 0
      %885 = vmatpush.bf16.msra.mxu0 %v864
      %886 = vmatpush.bf16.msra.mxu0 %v863
      %887 = vmatmul.bf16.gmra.mxu0 %v868
      %v888 = vpop.f32.mrf.mxu0
      %v889 = vadd.f32 0.0, %v888
      %v890 = vpop.f32.mrf.mxu0
      %v891 = vadd.f32 0.0, %v890
      %892 = vmatmul.bf16.gmra.mxu0 %v871
      %v893 = vpop.f32.mrf.mxu0
      %v894 = vadd.f32 0.0, %v893
      %v895 = vpop.f32.mrf.mxu0
      %v896 = vadd.f32 0.0, %v895
      %897 = vmatmul.bf16.gmra.mxu0 %v874
      %v898 = vpop.f32.mrf.mxu0
      %v899 = vadd.f32 0.0, %v898
      %v900 = vpop.f32.mrf.mxu0
      %v901 = vadd.f32 0.0, %v900
      %902 = vmatmul.bf16.gmra.mxu0 %v877
      %v903 = vpop.f32.mrf.mxu0
      %v904 = vadd.f32 0.0, %v903
      %v905 = vpop.f32.mrf.mxu0
      %v906 = vadd.f32 0.0, %v905
      %907 = vdwg.mxu0
      %v908 = vld [vmem:[%s8] sm:$0x1]
      %v910 = vperm.slane %v908, 0
      %v912 = vmul.f32 %v889, %v910
      %v913 = vmul.f32 %v891, %v910
      %v914 = vmul.f32 %v894, %v910
      %v915 = vmul.f32 %v896, %v910
      %v916 = vmul.f32 %v899, %v910
      %v917 = vmul.f32 %v901, %v910
      %v918 = vmul.f32 %v904, %v910
      %v919 = vmul.f32 %v906, %v910
      %v920 = vld [vmem:[%s9] sm:$0x1]
      %v922 = vperm.slane %v920, 0
      %v924 = vadd.f32 %v912, %v922
      %v925 = vadd.f32 %v913, %v922
      %v926 = vadd.f32 %v914, %v922
      %v927 = vadd.f32 %v915, %v922
      %v928 = vadd.f32 %v916, %v922
      %v929 = vadd.f32 %v917, %v922
      %v930 = vadd.f32 %v918, %v922
      %v931 = vadd.f32 %v919, %v922
      %v932 = vpack.c.bf16 %v924, %v924
      %v933 = vpack.c.bf16 %v925, %v925
      %v934 = vpack.c.bf16 %v926, %v926
      %v935 = vpack.c.bf16 %v927, %v927
      %v936 = vpack.c.bf16 %v928, %v928
      %v937 = vpack.c.bf16 %v929, %v929
      %v938 = vpack.c.bf16 %v930, %v930
      %v939 = vpack.c.bf16 %v931, %v931
      %vm940 = vcmask 125952
      %941 = vst.msk [vmem:[%s381] sm:$0xf] %vm940, %v932
      %942 = vst.msk [vmem:[%s381 + $0x4] sm:$0xf] %vm940, %v933
      %943 = vst.msk [vmem:[%s381 + $0x8] sm:$0xf] %vm940, %v934
      %944 = vst.msk [vmem:[%s381 + $0xc] sm:$0xf] %vm940, %v935
      %945 = vst.msk [vmem:[%s381 + $0x10] sm:$0xf] %vm940, %v936
      %946 = vst.msk [vmem:[%s381 + $0x14] sm:$0xf] %vm940, %v937
      %947 = vst.msk [vmem:[%s381 + $0x18] sm:$0xf] %vm940, %v938
      %948 = vst.msk [vmem:[%s381 + $0x1c] sm:$0xf] %vm940, %v939
      %s949 = smul.u32 8, %s26
      %p950 = scmp.lt.s32.totalorder %s25, 1
      %s951 = scalar_select %p950, %s25, 1
      %p952 = scmp.lt.s32.totalorder %s949, 7
      %s953 = scalar_select %p952, %s949, 7
      %s954 = smul.addr %s951, 8
      %s955 = sadd.s32 %s953, %s954
      %s956 = smul.addr %s955, 4
      %s957 = scalar_lea.vmem %s10, %s956
      // Predicated region
      $region65: #{bottleneck_layer.2} parent=59 // pred_check
        %p958 = pneg %p268
      $region66: #{bottleneck_layer.2} parent=59 // pred_check_branch
        %960 = sbr.rel (%p958) target = $region68
      $region67: #{bottleneck_layer.2} parent=59 // pred_region
        %s961 = smul.u32 8, %s26
      $region68: #{bottleneck_layer.2} parent=59 // pred_fallthru
        _
    $region60: #{bottleneck_layer.2} parent=5 // pred_fallthru
      _
    %p962 = scmp.le.s32.totalorder 2, %s16
    // Predicated region
    $region69: #{bottleneck_layer.2} parent=5 // pred_check
      %p963 = pneg %p962
    $region70: #{bottleneck_layer.2} parent=5 // pred_check_branch
      %965 = sbr.rel (%p963) target = $region72
    $region71: #{bottleneck_layer.2} parent=5 // pred_region
      %s966 = ssub.s32 %s16, 2
      // Predicated region
      $region73: #{bottleneck_layer.2} parent=71 // pred_check
        %p967 = pneg %p274
      $region74: #{bottleneck_layer.2} parent=71 // pred_check_branch
        %969 = sbr.rel (%p967) target = $region76
      $region75: #{bottleneck_layer.2} parent=71 // pred_region
        %s970 = smul.u32 8, %s28
        %p971 = scmp.lt.s32.totalorder %s27, 1
        %s972 = scalar_select %p971, %s27, 1
        %p973 = scmp.lt.s32.totalorder %s970, 7
        %s974 = scalar_select %p973, %s970, 7
        %s975 = smul.addr %s972, 8
        %s976 = sadd.s32 %s974, %s975
        %s977 = smul.addr %s976, 4
        %s978 = scalar_lea.vmem %s10, %s977
      $region76: #{bottleneck_layer.2} parent=71 // pred_fallthru
        _
    $region72: #{bottleneck_layer.2} parent=5 // pred_fallthru
      _
  $region6: #{bottleneck_layer.2} parent=0 // loop_footer
    %s20 = sadd.s32 1, %s16
  $region7: #{bottleneck_layer.2} parent=0 // loop_footer_branch
    %15 = sbr.rel target = $region3
  $region8: #{bottleneck_layer.2} parent=0 // loop_exit
    _

</llo_original>
